<compile_context>
chip_gen: v5e
topology: v5e:2x2
jax: 0.10.0
libtpu: 0.0.40
codegen_flags: <defaults>
</compile_context>

<pallas_src>
import functools
import math

import numpy as np
import jax
import jax.numpy as jnp
from jax import lax
from jax.experimental import pallas as pl
from jax.experimental.pallas import tpu as pltpu


# ---------------------------------------------------------------------------
# Depthwise 3x3 conv in (C, P) layout via lane rolls
# ---------------------------------------------------------------------------
def _dwconv3x3_relu(a, taps, bias, masks, W):
    """Depthwise 3x3 conv (stride 1, pad 1) + bias + ReLU in (C, P) layout.

    a:     (C, P) activations, P = N*H*W, pixel p = n*H*W + h*W + w
    taps:  (C, 9) depthwise taps, column k = ky*3 + kx (BN folded)
    bias:  (C, 1) folded bias
    masks: (9, P) 0/1 validity masks (zero padding + image boundaries)

    The 3x3 neighbourhood is gathered with pltpu.roll along the flattened pixel
    (lane) axis -- XLU work, no padded scratch buffer, no unaligned loads.
    """
    C, P = a.shape
    acc = jnp.zeros((C, P), jnp.float32)
    for ky in range(3):
        for kx in range(3):
            k = ky * 3 + kx
            d = (ky - 1) * W + (kx - 1)                 # source pixel offset
            src = a if d == 0 else pltpu.roll(a, shift=(-d) % P, axis=1)
            contrib = src * taps[:, k:k + 1]            # per-channel tap, lane-broadcast
            if d != 0:                                  # center tap never needs masking
                contrib = contrib * masks[k:k + 1, :]
            acc = acc + contrib
    return jnp.maximum(acc + bias, 0.0)


# ---------------------------------------------------------------------------
# Pallas kernel (single grid step, whole batch)
# ---------------------------------------------------------------------------
def moffn_kernel(x_ref, masks_ref, pool_ref, sel_ref,
                 w1t_ref, b1_ref, dw1_ref, bdw1_ref,
                 sew1a_ref, sew1b_ref, seb1_ref, sew2_ref, seb2_ref,
                 w2a_ref, w2b_ref, b2_ref, dw2_ref, bdw2_ref,
                 out_ref, *, W):
    f32 = jnp.float32
    x = x_ref[...]                                   # (Cin, P)
    masks = masks_ref[...]                           # (9, P)
    m1 = w1t_ref.shape[0]
    m2 = w2a_ref.shape[0]

    # ---- Ghost block 1 -----------------------------------------------------
    a1 = jnp.maximum(
        jnp.dot(w1t_ref[...], x, preferred_element_type=f32) + b1_ref[...], 0.0)   # (m1, P)
    y1 = _dwconv3x3_relu(a1, dw1_ref[...], bdw1_ref[...], masks, W)                # (m1, P)

    # ---- SE block (per-image pool / broadcast via constant pool & select) ---
    s_a = jnp.dot(a1, pool_ref[...], preferred_element_type=f32)                   # (m1, N)
    s_y = jnp.dot(y1, pool_ref[...], preferred_element_type=f32)                   # (m1, N)
    z1 = jnp.maximum(
        jnp.dot(sew1a_ref[...], s_a, preferred_element_type=f32)
        + jnp.dot(sew1b_ref[...], s_y, preferred_element_type=f32)
        + seb1_ref[...], 0.0)                                                      # (mid, N)
    z2 = jax.nn.sigmoid(
        jnp.dot(sew2_ref[...], z1, preferred_element_type=f32) + seb2_ref[...])    # (hidden, N)
    a1s = a1 * jnp.dot(z2[:m1, :], sel_ref[...], preferred_element_type=f32)       # per-image scale
    y1s = y1 * jnp.dot(z2[m1:, :], sel_ref[...], preferred_element_type=f32)

    # ---- Ghost block 2 (split pointwise matmul: no channel concat) ----------
    a2 = jnp.maximum(
        jnp.dot(w2a_ref[...], a1s, preferred_element_type=f32)
        + jnp.dot(w2b_ref[...], y1s, preferred_element_type=f32)
        + b2_ref[...], 0.0)                                                        # (m2, P)
    y2 = _dwconv3x3_relu(a2, dw2_ref[...], bdw2_ref[...], masks, W)                # (m2, P)

    # ---- residual, written as two channel slabs (lane-dense, no concat) -----
    out_ref[:m2, :] = a2 + x[:m2, :]
    out_ref[m2:, :] = y2 + x[m2:, :]


# ---------------------------------------------------------------------------
# Wrapper-side constant helpers
# ---------------------------------------------------------------------------
def _dwconv_masks(N, H, W):
    """(9, N*H*W) 0/1 masks: tap k=ky*3+kx valid at flattened pixel p."""
    P = N * H * W
    p = np.arange(P)
    w = p % W
    h = (p // W) % H
    m = np.zeros((9, P), np.float32)
    for ky in range(3):
        for kx in range(3):
            dh, dw = ky - 1, kx - 1
            ok = (h + dh >= 0) & (h + dh < H) & (w + dw >= 0) & (w + dw < W)
            m[ky * 3 + kx] = ok.astype(np.float32)
    return jnp.asarray(m)


def _pool_and_select(N, H, W):
    """pool: (P, N) with 1/(H*W) where pixel p belongs to image n; sel: (N, P) 0/1."""
    img = np.repeat(np.arange(N), H * W)
    sel = (img[None, :] == np.arange(N)[:, None]).astype(np.float32)
    pool = sel.T / float(H * W)
    return jnp.asarray(pool), jnp.asarray(sel)


# ---------------------------------------------------------------------------
# Wrapper (takes NCHW like the PyTorch module)
# ---------------------------------------------------------------------------
def moffn_forward(x_nchw, params):
    N, Cin, H, W = x_nchw.shape
    (w1, b1, dw1, bdw1, sew1, seb1, sew2, seb2, w2, b2, dw2, bdw2) = params
    m1 = w1.shape[1]
    P = N * H * W

    # channels on sublanes, pixels on lanes: (Cin, N*H*W); P = 512 is lane-dense.
    x2d = jnp.transpose(x_nchw, (1, 0, 2, 3)).reshape(Cin, P)
    masks = _dwconv_masks(N, H, W)
    pool, sel = _pool_and_select(N, H, W)

    kparams = (
        w1.T, b1.T, dw1.T, bdw1.T,                    # ghost1: pointwise + depthwise (BN folded)
        sew1[:m1].T, sew1[m1:].T, seb1.T,             # SE fc1 split over the two ghost halves
        sew2.T, seb2.T,                               # SE fc2
        w2[:m1].T, w2[m1:].T, b2.T, dw2.T, bdw2.T,    # ghost2 (pointwise split)
    )
    inputs = (x2d, masks, pool, sel) + kparams

    grid_spec = pltpu.PrefetchScalarGridSpec(
        num_scalar_prefetch=0,
        grid=(1,),                                     # whole batch in one grid step
        in_specs=[pl.BlockSpec(a.shape, lambda i: (0, 0)) for a in inputs],
        out_specs=pl.BlockSpec((Cin, P), lambda i: (0, 0)),
    )
    out2d = pl.pallas_call(
        functools.partial(moffn_kernel, W=W),
        out_shape=jax.ShapeDtypeStruct((Cin, P), jnp.float32),
        grid_spec=grid_spec,
        compiler_params=pltpu.CompilerParams(dimension_semantics=("arbitrary",)),
    )(*inputs)
    return jnp.transpose(out2d.reshape(Cin, N, H, W), (1, 0, 2, 3))   # back to NCHW


# ---------------------------------------------------------------------------
# Deterministic parameter init (BN already folded into weights/biases)
# ---------------------------------------------------------------------------
def init_moffn_params(key, inp, hidden, oup, se_reduction=16):
    m1 = math.ceil(0.5 * hidden)
    c1 = hidden - m1
    m2 = math.ceil(0.5 * oup)
    c2 = oup - m2
    assert c1 == m1 and c2 == m2, "dwconv3x3_block needs in==out channels (even widths)"
    mid = max(1, hidden // se_reduction)
    ks = jax.random.split(key, 12)

    def nrm(k, shape, s=0.25):
        return (s * jax.random.normal(k, shape)).astype(jnp.float32)

    return (
        nrm(ks[0], (inp, m1)),       # ghost1 pointwise conv weight (Cin, m1), BN folded
        nrm(ks[1], (1, m1)),         # ghost1 pointwise folded bias
        nrm(ks[2], (9, m1)),         # ghost1 depthwise 3x3 taps (ky*3+kx, C), BN folded
        nrm(ks[3], (1, m1)),         # ghost1 depthwise folded bias
        nrm(ks[4], (hidden, mid)),   # SE fc1 weight
        nrm(ks[5], (1, mid)),        # SE fc1 bias
        nrm(ks[6], (mid, hidden)),   # SE fc2 weight
        nrm(ks[7], (1, hidden)),     # SE fc2 bias
        nrm(ks[8], (hidden, m2)),    # ghost2 pointwise conv weight
        nrm(ks[9], (1, m2)),         # ghost2 pointwise folded bias
        nrm(ks[10], (9, m2)),        # ghost2 depthwise taps
        nrm(ks[11], (1, m2)),        # ghost2 depthwise folded bias
    )


# ---------------------------------------------------------------------------
# Pure-JAX reference (NCHW in/out) for correctness check
# ---------------------------------------------------------------------------
def ref_moffn_nchw(x_nchw, params):
    w1, b1, dw1, bdw1, sew1, seb1, sew2, seb2, w2, b2, dw2, bdw2 = params
    x = jnp.transpose(x_nchw, (0, 2, 3, 1))          # NHWC

    def pw(x, w, b):
        return jnp.maximum(jnp.einsum('nhwc,cd->nhwd', x, w) + b.reshape(1, 1, 1, -1), 0.0)

    def dw(x, w9, b):
        C = x.shape[-1]
        k = w9.reshape(3, 3, 1, C)
        y = lax.conv_general_dilated(x, k, window_strides=(1, 1),
                                     padding=((1, 1), (1, 1)),
                                     dimension_numbers=('NHWC', 'HWIO', 'NHWC'),
                                     feature_group_count=C)
        return jnp.maximum(y + b.reshape(1, 1, 1, -1), 0.0)

    def ghost(x, wp, bp, wd, bd):
        a = pw(x, wp, bp)
        y = dw(a, wd, bd)
        return jnp.concatenate([a, y], axis=-1)

    h = ghost(x, w1, b1, dw1, bdw1)
    s = jnp.mean(h, axis=(1, 2))
    z = jnp.maximum(s @ sew1 + seb1, 0.0)
    z = jax.nn.sigmoid(z @ sew2 + seb2)
    h = h * z[:, None, None, :]
    h = ghost(h, w2, b2, dw2, bdw2)
    return jnp.transpose(h + x, (0, 3, 1, 2))        # back to NCHW


if __name__ == "__main__":
    key = jax.random.PRNGKey(0)
    N, C, H, W = 2, 4, 16, 16
    inp, hidden, oup = C, 32, C            # residual requires oup == inp
    kx, kp = jax.random.split(key)
    x = jax.random.normal(kx, (N, C, H, W), jnp.float32)   # NCHW, like the PyTorch module
    params = init_moffn_params(kp, inp, hidden, oup)

    out = jax.block_until_ready(moffn_forward(x, params))
    ref = jax.block_until_ready(ref_moffn_nchw(x, params))

    assert out.shape == (N, oup, H, W)
    max_err = float(jnp.max(jnp.abs(out - ref)))
    assert jnp.allclose(out, ref, atol=1e-3, rtol=1e-3), f"max err {max_err}"
    print("KERNEL_OK")
</pallas_src>

<mosaic_0001>
module attributes {stable_mosaic.version = 11 : i64} {
  func.func @moffn_kernel(%arg0: i32, %arg1: memref<4x512xf32, #tpu.memory_space<vmem>>, %arg2: memref<9x512xf32, #tpu.memory_space<vmem>>, %arg3: memref<512x2xf32, #tpu.memory_space<vmem>>, %arg4: memref<2x512xf32, #tpu.memory_space<vmem>>, %arg5: memref<16x4xf32, #tpu.memory_space<vmem>>, %arg6: memref<16x1xf32, #tpu.memory_space<vmem>>, %arg7: memref<16x9xf32, #tpu.memory_space<vmem>>, %arg8: memref<16x1xf32, #tpu.memory_space<vmem>>, %arg9: memref<2x16xf32, #tpu.memory_space<vmem>>, %arg10: memref<2x16xf32, #tpu.memory_space<vmem>>, %arg11: memref<2x1xf32, #tpu.memory_space<vmem>>, %arg12: memref<32x2xf32, #tpu.memory_space<vmem>>, %arg13: memref<32x1xf32, #tpu.memory_space<vmem>>, %arg14: memref<2x16xf32, #tpu.memory_space<vmem>>, %arg15: memref<2x16xf32, #tpu.memory_space<vmem>>, %arg16: memref<2x1xf32, #tpu.memory_space<vmem>>, %arg17: memref<2x9xf32, #tpu.memory_space<vmem>>, %arg18: memref<2x1xf32, #tpu.memory_space<vmem>>, %arg19: memref<4x512xf32, #tpu.memory_space<vmem>>) attributes {dimension_semantics = [#tpu.dimension_semantics<arbitrary>], iteration_bounds = array<i64: 1>, scalar_prefetch = 0 : i64, scratch_operands = 0 : i64, tpu.core_type = #tpu.core_type<tc>, window_params = [{pipeline_mode = #tpu.pipeline_mode<synchronous>, transform_indices = @transform_0, window_bounds = array<i64: 4, 512>}, {pipeline_mode = #tpu.pipeline_mode<synchronous>, transform_indices = @transform_1, window_bounds = array<i64: 9, 512>}, {pipeline_mode = #tpu.pipeline_mode<synchronous>, transform_indices = @transform_2, window_bounds = array<i64: 512, 2>}, {pipeline_mode = #tpu.pipeline_mode<synchronous>, transform_indices = @transform_3, window_bounds = array<i64: 2, 512>}, {pipeline_mode = #tpu.pipeline_mode<synchronous>, transform_indices = @transform_4, window_bounds = array<i64: 16, 4>}, {pipeline_mode = #tpu.pipeline_mode<synchronous>, transform_indices = @transform_5, window_bounds = array<i64: 16, 1>}, {pipeline_mode = #tpu.pipeline_mode<synchronous>, transform_indices = @transform_6, window_bounds = array<i64: 16, 9>}, {pipeline_mode = #tpu.pipeline_mode<synchronous>, transform_indices = @transform_7, window_bounds = array<i64: 16, 1>}, {pipeline_mode = #tpu.pipeline_mode<synchronous>, transform_indices = @transform_8, window_bounds = array<i64: 2, 16>}, {pipeline_mode = #tpu.pipeline_mode<synchronous>, transform_indices = @transform_9, window_bounds = array<i64: 2, 16>}, {pipeline_mode = #tpu.pipeline_mode<synchronous>, transform_indices = @transform_10, window_bounds = array<i64: 2, 1>}, {pipeline_mode = #tpu.pipeline_mode<synchronous>, transform_indices = @transform_11, window_bounds = array<i64: 32, 2>}, {pipeline_mode = #tpu.pipeline_mode<synchronous>, transform_indices = @transform_12, window_bounds = array<i64: 32, 1>}, {pipeline_mode = #tpu.pipeline_mode<synchronous>, transform_indices = @transform_13, window_bounds = array<i64: 2, 16>}, {pipeline_mode = #tpu.pipeline_mode<synchronous>, transform_indices = @transform_14, window_bounds = array<i64: 2, 16>}, {pipeline_mode = #tpu.pipeline_mode<synchronous>, transform_indices = @transform_15, window_bounds = array<i64: 2, 1>}, {pipeline_mode = #tpu.pipeline_mode<synchronous>, transform_indices = @transform_16, window_bounds = array<i64: 2, 9>}, {pipeline_mode = #tpu.pipeline_mode<synchronous>, transform_indices = @transform_17, window_bounds = array<i64: 2, 1>}, {pipeline_mode = #tpu.pipeline_mode<synchronous>, transform_indices = @transform_18, window_bounds = array<i64: 4, 512>}]} {
    %c0 = arith.constant 0 : index
    %c0_0 = arith.constant 0 : index
    %0 = vector.load %arg1[%c0, %c0_0] : memref<4x512xf32, #tpu.memory_space<vmem>>, vector<4x512xf32>
    %c0_1 = arith.constant 0 : index
    %c0_2 = arith.constant 0 : index
    %1 = vector.load %arg2[%c0_1, %c0_2] : memref<9x512xf32, #tpu.memory_space<vmem>>, vector<9x512xf32>
    %c0_3 = arith.constant 0 : index
    %c0_4 = arith.constant 0 : index
    %2 = vector.load %arg5[%c0_3, %c0_4] : memref<16x4xf32, #tpu.memory_space<vmem>>, vector<16x4xf32>
    %cst = arith.constant dense<0.000000e+00> : vector<16x512xf32>
    %3 = tpu.matmul %2, %0, %cst {dimension_numbers = #tpu.dot_dimension_numbers<[1], [0], [0], [1], [0, 0, 1, 1], [], []>} : vector<16x4xf32>, vector<4x512xf32>, vector<16x512xf32> -> vector<16x512xf32>
    %c0_5 = arith.constant 0 : index
    %c0_6 = arith.constant 0 : index
    %4 = vector.load %arg6[%c0_5, %c0_6] : memref<16x1xf32, #tpu.memory_space<vmem>>, vector<16x1xf32>
    %5 = vector.broadcast %4 : vector<16x1xf32> to vector<16x512xf32>
    %6 = arith.addf %3, %5 : vector<16x512xf32>
    %cst_7 = arith.constant 0.000000e+00 : f32
    %7 = vector.broadcast %cst_7 : f32 to vector<16x512xf32>
    %8 = arith.maximumf %6, %7 : vector<16x512xf32>
    %c0_8 = arith.constant 0 : index
    %c0_9 = arith.constant 0 : index
    %9 = vector.load %arg7[%c0_8, %c0_9] : memref<16x9xf32, #tpu.memory_space<vmem>>, vector<16x9xf32>
    %c0_10 = arith.constant 0 : index
    %c0_11 = arith.constant 0 : index
    %10 = vector.load %arg8[%c0_10, %c0_11] : memref<16x1xf32, #tpu.memory_space<vmem>>, vector<16x1xf32>
    %cst_12 = arith.constant 0.000000e+00 : f32
    %11 = vector.broadcast %cst_12 : f32 to vector<16x512xf32>
    %c17_i32 = arith.constant 17 : i32
    %12 = tpu.dynamic_rotate %8 by %c17_i32 dim 1 : vector<16x512xf32>, i32 -> vector<16x512xf32>
    %13 = vector.extract_strided_slice %9 {offsets = [0, 0], sizes = [16, 1], strides = [1, 1]} : vector<16x9xf32> to vector<16x1xf32>
    %14 = vector.broadcast %13 : vector<16x1xf32> to vector<16x512xf32>
    %15 = arith.mulf %12, %14 : vector<16x512xf32>
    %16 = vector.extract_strided_slice %1 {offsets = [0, 0], sizes = [1, 512], strides = [1, 1]} : vector<9x512xf32> to vector<1x512xf32>
    %17 = vector.broadcast %16 : vector<1x512xf32> to vector<16x512xf32>
    %18 = arith.mulf %15, %17 : vector<16x512xf32>
    %19 = arith.addf %11, %18 : vector<16x512xf32>
    %c16_i32 = arith.constant 16 : i32
    %20 = tpu.dynamic_rotate %8 by %c16_i32 dim 1 : vector<16x512xf32>, i32 -> vector<16x512xf32>
    %21 = vector.extract_strided_slice %9 {offsets = [0, 1], sizes = [16, 1], strides = [1, 1]} : vector<16x9xf32> to vector<16x1xf32>
    %22 = vector.broadcast %21 : vector<16x1xf32> to vector<16x512xf32>
    %23 = arith.mulf %20, %22 : vector<16x512xf32>
    %24 = vector.extract_strided_slice %1 {offsets = [1, 0], sizes = [1, 512], strides = [1, 1]} : vector<9x512xf32> to vector<1x512xf32>
    %25 = vector.broadcast %24 : vector<1x512xf32> to vector<16x512xf32>
    %26 = arith.mulf %23, %25 : vector<16x512xf32>
    %27 = arith.addf %19, %26 : vector<16x512xf32>
    %c15_i32 = arith.constant 15 : i32
    %28 = tpu.dynamic_rotate %8 by %c15_i32 dim 1 : vector<16x512xf32>, i32 -> vector<16x512xf32>
    %29 = vector.extract_strided_slice %9 {offsets = [0, 2], sizes = [16, 1], strides = [1, 1]} : vector<16x9xf32> to vector<16x1xf32>
    %30 = vector.broadcast %29 : vector<16x1xf32> to vector<16x512xf32>
    %31 = arith.mulf %28, %30 : vector<16x512xf32>
    %32 = vector.extract_strided_slice %1 {offsets = [2, 0], sizes = [1, 512], strides = [1, 1]} : vector<9x512xf32> to vector<1x512xf32>
    %33 = vector.broadcast %32 : vector<1x512xf32> to vector<16x512xf32>
    %34 = arith.mulf %31, %33 : vector<16x512xf32>
    %35 = arith.addf %27, %34 : vector<16x512xf32>
    %c1_i32 = arith.constant 1 : i32
    %36 = tpu.dynamic_rotate %8 by %c1_i32 dim 1 : vector<16x512xf32>, i32 -> vector<16x512xf32>
    %37 = vector.extract_strided_slice %9 {offsets = [0, 3], sizes = [16, 1], strides = [1, 1]} : vector<16x9xf32> to vector<16x1xf32>
    %38 = vector.broadcast %37 : vector<16x1xf32> to vector<16x512xf32>
    %39 = arith.mulf %36, %38 : vector<16x512xf32>
    %40 = vector.extract_strided_slice %1 {offsets = [3, 0], sizes = [1, 512], strides = [1, 1]} : vector<9x512xf32> to vector<1x512xf32>
    %41 = vector.broadcast %40 : vector<1x512xf32> to vector<16x512xf32>
    %42 = arith.mulf %39, %41 : vector<16x512xf32>
    %43 = arith.addf %35, %42 : vector<16x512xf32>
    %44 = vector.extract_strided_slice %9 {offsets = [0, 4], sizes = [16, 1], strides = [1, 1]} : vector<16x9xf32> to vector<16x1xf32>
    %45 = vector.broadcast %44 : vector<16x1xf32> to vector<16x512xf32>
    %46 = arith.mulf %8, %45 : vector<16x512xf32>
    %47 = arith.addf %43, %46 : vector<16x512xf32>
    %c511_i32 = arith.constant 511 : i32
    %48 = tpu.dynamic_rotate %8 by %c511_i32 dim 1 : vector<16x512xf32>, i32 -> vector<16x512xf32>
    %49 = vector.extract_strided_slice %9 {offsets = [0, 5], sizes = [16, 1], strides = [1, 1]} : vector<16x9xf32> to vector<16x1xf32>
    %50 = vector.broadcast %49 : vector<16x1xf32> to vector<16x512xf32>
    %51 = arith.mulf %48, %50 : vector<16x512xf32>
    %52 = vector.extract_strided_slice %1 {offsets = [5, 0], sizes = [1, 512], strides = [1, 1]} : vector<9x512xf32> to vector<1x512xf32>
    %53 = vector.broadcast %52 : vector<1x512xf32> to vector<16x512xf32>
    %54 = arith.mulf %51, %53 : vector<16x512xf32>
    %55 = arith.addf %47, %54 : vector<16x512xf32>
    %c497_i32 = arith.constant 497 : i32
    %56 = tpu.dynamic_rotate %8 by %c497_i32 dim 1 : vector<16x512xf32>, i32 -> vector<16x512xf32>
    %57 = vector.extract_strided_slice %9 {offsets = [0, 6], sizes = [16, 1], strides = [1, 1]} : vector<16x9xf32> to vector<16x1xf32>
    %58 = vector.broadcast %57 : vector<16x1xf32> to vector<16x512xf32>
    %59 = arith.mulf %56, %58 : vector<16x512xf32>
    %60 = vector.extract_strided_slice %1 {offsets = [6, 0], sizes = [1, 512], strides = [1, 1]} : vector<9x512xf32> to vector<1x512xf32>
    %61 = vector.broadcast %60 : vector<1x512xf32> to vector<16x512xf32>
    %62 = arith.mulf %59, %61 : vector<16x512xf32>
    %63 = arith.addf %55, %62 : vector<16x512xf32>
    %c496_i32 = arith.constant 496 : i32
    %64 = tpu.dynamic_rotate %8 by %c496_i32 dim 1 : vector<16x512xf32>, i32 -> vector<16x512xf32>
    %65 = vector.extract_strided_slice %9 {offsets = [0, 7], sizes = [16, 1], strides = [1, 1]} : vector<16x9xf32> to vector<16x1xf32>
    %66 = vector.broadcast %65 : vector<16x1xf32> to vector<16x512xf32>
    %67 = arith.mulf %64, %66 : vector<16x512xf32>
    %68 = vector.extract_strided_slice %1 {offsets = [7, 0], sizes = [1, 512], strides = [1, 1]} : vector<9x512xf32> to vector<1x512xf32>
    %69 = vector.broadcast %68 : vector<1x512xf32> to vector<16x512xf32>
    %70 = arith.mulf %67, %69 : vector<16x512xf32>
    %71 = arith.addf %63, %70 : vector<16x512xf32>
    %c495_i32 = arith.constant 495 : i32
    %72 = tpu.dynamic_rotate %8 by %c495_i32 dim 1 : vector<16x512xf32>, i32 -> vector<16x512xf32>
    %73 = vector.extract_strided_slice %9 {offsets = [0, 8], sizes = [16, 1], strides = [1, 1]} : vector<16x9xf32> to vector<16x1xf32>
    %74 = vector.broadcast %73 : vector<16x1xf32> to vector<16x512xf32>
    %75 = arith.mulf %72, %74 : vector<16x512xf32>
    %76 = vector.extract_strided_slice %1 {offsets = [8, 0], sizes = [1, 512], strides = [1, 1]} : vector<9x512xf32> to vector<1x512xf32>
    %77 = vector.broadcast %76 : vector<1x512xf32> to vector<16x512xf32>
    %78 = arith.mulf %75, %77 : vector<16x512xf32>
    %79 = arith.addf %71, %78 : vector<16x512xf32>
    %80 = vector.broadcast %10 : vector<16x1xf32> to vector<16x512xf32>
    %81 = arith.addf %79, %80 : vector<16x512xf32>
    %cst_13 = arith.constant 0.000000e+00 : f32
    %82 = vector.broadcast %cst_13 : f32 to vector<16x512xf32>
    %83 = arith.maximumf %81, %82 : vector<16x512xf32>
    %c0_14 = arith.constant 0 : index
    %c0_15 = arith.constant 0 : index
    %84 = vector.load %arg3[%c0_14, %c0_15] : memref<512x2xf32, #tpu.memory_space<vmem>>, vector<512x2xf32>
    %cst_16 = arith.constant dense<0.000000e+00> : vector<16x2xf32>
    %85 = tpu.matmul %8, %84, %cst_16 {dimension_numbers = #tpu.dot_dimension_numbers<[1], [0], [0], [1], [0, 0, 1, 1], [], []>} : vector<16x512xf32>, vector<512x2xf32>, vector<16x2xf32> -> vector<16x2xf32>
    %c0_17 = arith.constant 0 : index
    %c0_18 = arith.constant 0 : index
    %86 = vector.load %arg3[%c0_17, %c0_18] : memref<512x2xf32, #tpu.memory_space<vmem>>, vector<512x2xf32>
    %cst_19 = arith.constant dense<0.000000e+00> : vector<16x2xf32>
    %87 = tpu.matmul %83, %86, %cst_19 {dimension_numbers = #tpu.dot_dimension_numbers<[1], [0], [0], [1], [0, 0, 1, 1], [], []>} : vector<16x512xf32>, vector<512x2xf32>, vector<16x2xf32> -> vector<16x2xf32>
    %c0_20 = arith.constant 0 : index
    %c0_21 = arith.constant 0 : index
    %88 = vector.load %arg9[%c0_20, %c0_21] : memref<2x16xf32, #tpu.memory_space<vmem>>, vector<2x16xf32>
    %cst_22 = arith.constant dense<0.000000e+00> : vector<2x2xf32>
    %89 = tpu.matmul %88, %85, %cst_22 {dimension_numbers = #tpu.dot_dimension_numbers<[1], [0], [0], [1], [0, 0, 1, 1], [], []>} : vector<2x16xf32>, vector<16x2xf32>, vector<2x2xf32> -> vector<2x2xf32>
    %c0_23 = arith.constant 0 : index
    %c0_24 = arith.constant 0 : index
    %90 = vector.load %arg10[%c0_23, %c0_24] : memref<2x16xf32, #tpu.memory_space<vmem>>, vector<2x16xf32>
    %cst_25 = arith.constant dense<0.000000e+00> : vector<2x2xf32>
    %91 = tpu.matmul %90, %87, %cst_25 {dimension_numbers = #tpu.dot_dimension_numbers<[1], [0], [0], [1], [0, 0, 1, 1], [], []>} : vector<2x16xf32>, vector<16x2xf32>, vector<2x2xf32> -> vector<2x2xf32>
    %92 = arith.addf %89, %91 : vector<2x2xf32>
    %c0_26 = arith.constant 0 : index
    %c0_27 = arith.constant 0 : index
    %93 = vector.load %arg11[%c0_26, %c0_27] : memref<2x1xf32, #tpu.memory_space<vmem>>, vector<2x1xf32>
    %94 = vector.broadcast %93 : vector<2x1xf32> to vector<2x2xf32>
    %95 = arith.addf %92, %94 : vector<2x2xf32>
    %cst_28 = arith.constant 0.000000e+00 : f32
    %96 = vector.broadcast %cst_28 : f32 to vector<2x2xf32>
    %97 = arith.maximumf %95, %96 : vector<2x2xf32>
    %c0_29 = arith.constant 0 : index
    %c0_30 = arith.constant 0 : index
    %98 = vector.load %arg12[%c0_29, %c0_30] : memref<32x2xf32, #tpu.memory_space<vmem>>, vector<32x2xf32>
    %cst_31 = arith.constant dense<0.000000e+00> : vector<32x2xf32>
    %99 = tpu.matmul %98, %97, %cst_31 {dimension_numbers = #tpu.dot_dimension_numbers<[1], [0], [0], [1], [0, 0, 1, 1], [], []>} : vector<32x2xf32>, vector<2x2xf32>, vector<32x2xf32> -> vector<32x2xf32>
    %c0_32 = arith.constant 0 : index
    %c0_33 = arith.constant 0 : index
    %100 = vector.load %arg13[%c0_32, %c0_33] : memref<32x1xf32, #tpu.memory_space<vmem>>, vector<32x1xf32>
    %101 = vector.broadcast %100 : vector<32x1xf32> to vector<32x2xf32>
    %102 = arith.addf %99, %101 : vector<32x2xf32>
    %103 = arith.negf %102 : vector<32x2xf32>
    %104 = math.exp %103 : vector<32x2xf32>
    %cst_34 = arith.constant 1.000000e+00 : f32
    %105 = vector.broadcast %cst_34 : f32 to vector<32x2xf32>
    %106 = arith.addf %105, %104 : vector<32x2xf32>
    %107 = arith.divf %105, %106 : vector<32x2xf32>
    %108 = vector.extract_strided_slice %107 {offsets = [0, 0], sizes = [16, 2], strides = [1, 1]} : vector<32x2xf32> to vector<16x2xf32>
    %c0_35 = arith.constant 0 : index
    %c0_36 = arith.constant 0 : index
    %109 = vector.load %arg4[%c0_35, %c0_36] : memref<2x512xf32, #tpu.memory_space<vmem>>, vector<2x512xf32>
    %cst_37 = arith.constant dense<0.000000e+00> : vector<16x512xf32>
    %110 = tpu.matmul %108, %109, %cst_37 {dimension_numbers = #tpu.dot_dimension_numbers<[1], [0], [0], [1], [0, 0, 1, 1], [], []>} : vector<16x2xf32>, vector<2x512xf32>, vector<16x512xf32> -> vector<16x512xf32>
    %111 = arith.mulf %8, %110 : vector<16x512xf32>
    %112 = vector.extract_strided_slice %107 {offsets = [16, 0], sizes = [16, 2], strides = [1, 1]} : vector<32x2xf32> to vector<16x2xf32>
    %c0_38 = arith.constant 0 : index
    %c0_39 = arith.constant 0 : index
    %113 = vector.load %arg4[%c0_38, %c0_39] : memref<2x512xf32, #tpu.memory_space<vmem>>, vector<2x512xf32>
    %cst_40 = arith.constant dense<0.000000e+00> : vector<16x512xf32>
    %114 = tpu.matmul %112, %113, %cst_40 {dimension_numbers = #tpu.dot_dimension_numbers<[1], [0], [0], [1], [0, 0, 1, 1], [], []>} : vector<16x2xf32>, vector<2x512xf32>, vector<16x512xf32> -> vector<16x512xf32>
    %115 = arith.mulf %83, %114 : vector<16x512xf32>
    %c0_41 = arith.constant 0 : index
    %c0_42 = arith.constant 0 : index
    %116 = vector.load %arg14[%c0_41, %c0_42] : memref<2x16xf32, #tpu.memory_space<vmem>>, vector<2x16xf32>
    %cst_43 = arith.constant dense<0.000000e+00> : vector<2x512xf32>
    %117 = tpu.matmul %116, %111, %cst_43 {dimension_numbers = #tpu.dot_dimension_numbers<[1], [0], [0], [1], [0, 0, 1, 1], [], []>} : vector<2x16xf32>, vector<16x512xf32>, vector<2x512xf32> -> vector<2x512xf32>
    %c0_44 = arith.constant 0 : index
    %c0_45 = arith.constant 0 : index
    %118 = vector.load %arg15[%c0_44, %c0_45] : memref<2x16xf32, #tpu.memory_space<vmem>>, vector<2x16xf32>
    %cst_46 = arith.constant dense<0.000000e+00> : vector<2x512xf32>
    %119 = tpu.matmul %118, %115, %cst_46 {dimension_numbers = #tpu.dot_dimension_numbers<[1], [0], [0], [1], [0, 0, 1, 1], [], []>} : vector<2x16xf32>, vector<16x512xf32>, vector<2x512xf32> -> vector<2x512xf32>
    %120 = arith.addf %117, %119 : vector<2x512xf32>
    %c0_47 = arith.constant 0 : index
    %c0_48 = arith.constant 0 : index
    %121 = vector.load %arg16[%c0_47, %c0_48] : memref<2x1xf32, #tpu.memory_space<vmem>>, vector<2x1xf32>
    %122 = vector.broadcast %121 : vector<2x1xf32> to vector<2x512xf32>
    %123 = arith.addf %120, %122 : vector<2x512xf32>
    %cst_49 = arith.constant 0.000000e+00 : f32
    %124 = vector.broadcast %cst_49 : f32 to vector<2x512xf32>
    %125 = arith.maximumf %123, %124 : vector<2x512xf32>
    %c0_50 = arith.constant 0 : index
    %c0_51 = arith.constant 0 : index
    %126 = vector.load %arg17[%c0_50, %c0_51] : memref<2x9xf32, #tpu.memory_space<vmem>>, vector<2x9xf32>
    %c0_52 = arith.constant 0 : index
    %c0_53 = arith.constant 0 : index
    %127 = vector.load %arg18[%c0_52, %c0_53] : memref<2x1xf32, #tpu.memory_space<vmem>>, vector<2x1xf32>
    %cst_54 = arith.constant 0.000000e+00 : f32
    %128 = vector.broadcast %cst_54 : f32 to vector<2x512xf32>
    %c17_i32_55 = arith.constant 17 : i32
    %129 = tpu.dynamic_rotate %125 by %c17_i32_55 dim 1 : vector<2x512xf32>, i32 -> vector<2x512xf32>
    %130 = vector.extract_strided_slice %126 {offsets = [0, 0], sizes = [2, 1], strides = [1, 1]} : vector<2x9xf32> to vector<2x1xf32>
    %131 = vector.broadcast %130 : vector<2x1xf32> to vector<2x512xf32>
    %132 = arith.mulf %129, %131 : vector<2x512xf32>
    %133 = vector.extract_strided_slice %1 {offsets = [0, 0], sizes = [1, 512], strides = [1, 1]} : vector<9x512xf32> to vector<1x512xf32>
    %134 = vector.broadcast %133 : vector<1x512xf32> to vector<2x512xf32>
    %135 = arith.mulf %132, %134 : vector<2x512xf32>
    %136 = arith.addf %128, %135 : vector<2x512xf32>
    %c16_i32_56 = arith.constant 16 : i32
    %137 = tpu.dynamic_rotate %125 by %c16_i32_56 dim 1 : vector<2x512xf32>, i32 -> vector<2x512xf32>
    %138 = vector.extract_strided_slice %126 {offsets = [0, 1], sizes = [2, 1], strides = [1, 1]} : vector<2x9xf32> to vector<2x1xf32>
    %139 = vector.broadcast %138 : vector<2x1xf32> to vector<2x512xf32>
    %140 = arith.mulf %137, %139 : vector<2x512xf32>
    %141 = vector.extract_strided_slice %1 {offsets = [1, 0], sizes = [1, 512], strides = [1, 1]} : vector<9x512xf32> to vector<1x512xf32>
    %142 = vector.broadcast %141 : vector<1x512xf32> to vector<2x512xf32>
    %143 = arith.mulf %140, %142 : vector<2x512xf32>
    %144 = arith.addf %136, %143 : vector<2x512xf32>
    %c15_i32_57 = arith.constant 15 : i32
    %145 = tpu.dynamic_rotate %125 by %c15_i32_57 dim 1 : vector<2x512xf32>, i32 -> vector<2x512xf32>
    %146 = vector.extract_strided_slice %126 {offsets = [0, 2], sizes = [2, 1], strides = [1, 1]} : vector<2x9xf32> to vector<2x1xf32>
    %147 = vector.broadcast %146 : vector<2x1xf32> to vector<2x512xf32>
    %148 = arith.mulf %145, %147 : vector<2x512xf32>
    %149 = vector.extract_strided_slice %1 {offsets = [2, 0], sizes = [1, 512], strides = [1, 1]} : vector<9x512xf32> to vector<1x512xf32>
    %150 = vector.broadcast %149 : vector<1x512xf32> to vector<2x512xf32>
    %151 = arith.mulf %148, %150 : vector<2x512xf32>
    %152 = arith.addf %144, %151 : vector<2x512xf32>
    %c1_i32_58 = arith.constant 1 : i32
    %153 = tpu.dynamic_rotate %125 by %c1_i32_58 dim 1 : vector<2x512xf32>, i32 -> vector<2x512xf32>
    %154 = vector.extract_strided_slice %126 {offsets = [0, 3], sizes = [2, 1], strides = [1, 1]} : vector<2x9xf32> to vector<2x1xf32>
    %155 = vector.broadcast %154 : vector<2x1xf32> to vector<2x512xf32>
    %156 = arith.mulf %153, %155 : vector<2x512xf32>
    %157 = vector.extract_strided_slice %1 {offsets = [3, 0], sizes = [1, 512], strides = [1, 1]} : vector<9x512xf32> to vector<1x512xf32>
    %158 = vector.broadcast %157 : vector<1x512xf32> to vector<2x512xf32>
    %159 = arith.mulf %156, %158 : vector<2x512xf32>
    %160 = arith.addf %152, %159 : vector<2x512xf32>
    %161 = vector.extract_strided_slice %126 {offsets = [0, 4], sizes = [2, 1], strides = [1, 1]} : vector<2x9xf32> to vector<2x1xf32>
    %162 = vector.broadcast %161 : vector<2x1xf32> to vector<2x512xf32>
    %163 = arith.mulf %125, %162 : vector<2x512xf32>
    %164 = arith.addf %160, %163 : vector<2x512xf32>
    %c511_i32_59 = arith.constant 511 : i32
    %165 = tpu.dynamic_rotate %125 by %c511_i32_59 dim 1 : vector<2x512xf32>, i32 -> vector<2x512xf32>
    %166 = vector.extract_strided_slice %126 {offsets = [0, 5], sizes = [2, 1], strides = [1, 1]} : vector<2x9xf32> to vector<2x1xf32>
    %167 = vector.broadcast %166 : vector<2x1xf32> to vector<2x512xf32>
    %168 = arith.mulf %165, %167 : vector<2x512xf32>
    %169 = vector.extract_strided_slice %1 {offsets = [5, 0], sizes = [1, 512], strides = [1, 1]} : vector<9x512xf32> to vector<1x512xf32>
    %170 = vector.broadcast %169 : vector<1x512xf32> to vector<2x512xf32>
    %171 = arith.mulf %168, %170 : vector<2x512xf32>
    %172 = arith.addf %164, %171 : vector<2x512xf32>
    %c497_i32_60 = arith.constant 497 : i32
    %173 = tpu.dynamic_rotate %125 by %c497_i32_60 dim 1 : vector<2x512xf32>, i32 -> vector<2x512xf32>
    %174 = vector.extract_strided_slice %126 {offsets = [0, 6], sizes = [2, 1], strides = [1, 1]} : vector<2x9xf32> to vector<2x1xf32>
    %175 = vector.broadcast %174 : vector<2x1xf32> to vector<2x512xf32>
    %176 = arith.mulf %173, %175 : vector<2x512xf32>
    %177 = vector.extract_strided_slice %1 {offsets = [6, 0], sizes = [1, 512], strides = [1, 1]} : vector<9x512xf32> to vector<1x512xf32>
    %178 = vector.broadcast %177 : vector<1x512xf32> to vector<2x512xf32>
    %179 = arith.mulf %176, %178 : vector<2x512xf32>
    %180 = arith.addf %172, %179 : vector<2x512xf32>
    %c496_i32_61 = arith.constant 496 : i32
    %181 = tpu.dynamic_rotate %125 by %c496_i32_61 dim 1 : vector<2x512xf32>, i32 -> vector<2x512xf32>
    %182 = vector.extract_strided_slice %126 {offsets = [0, 7], sizes = [2, 1], strides = [1, 1]} : vector<2x9xf32> to vector<2x1xf32>
    %183 = vector.broadcast %182 : vector<2x1xf32> to vector<2x512xf32>
    %184 = arith.mulf %181, %183 : vector<2x512xf32>
    %185 = vector.extract_strided_slice %1 {offsets = [7, 0], sizes = [1, 512], strides = [1, 1]} : vector<9x512xf32> to vector<1x512xf32>
    %186 = vector.broadcast %185 : vector<1x512xf32> to vector<2x512xf32>
    %187 = arith.mulf %184, %186 : vector<2x512xf32>
    %188 = arith.addf %180, %187 : vector<2x512xf32>
    %c495_i32_62 = arith.constant 495 : i32
    %189 = tpu.dynamic_rotate %125 by %c495_i32_62 dim 1 : vector<2x512xf32>, i32 -> vector<2x512xf32>
    %190 = vector.extract_strided_slice %126 {offsets = [0, 8], sizes = [2, 1], strides = [1, 1]} : vector<2x9xf32> to vector<2x1xf32>
    %191 = vector.broadcast %190 : vector<2x1xf32> to vector<2x512xf32>
    %192 = arith.mulf %189, %191 : vector<2x512xf32>
    %193 = vector.extract_strided_slice %1 {offsets = [8, 0], sizes = [1, 512], strides = [1, 1]} : vector<9x512xf32> to vector<1x512xf32>
    %194 = vector.broadcast %193 : vector<1x512xf32> to vector<2x512xf32>
    %195 = arith.mulf %192, %194 : vector<2x512xf32>
    %196 = arith.addf %188, %195 : vector<2x512xf32>
    %197 = vector.broadcast %127 : vector<2x1xf32> to vector<2x512xf32>
    %198 = arith.addf %196, %197 : vector<2x512xf32>
    %cst_63 = arith.constant 0.000000e+00 : f32
    %199 = vector.broadcast %cst_63 : f32 to vector<2x512xf32>
    %200 = arith.maximumf %198, %199 : vector<2x512xf32>
    %201 = vector.extract_strided_slice %0 {offsets = [0, 0], sizes = [2, 512], strides = [1, 1]} : vector<4x512xf32> to vector<2x512xf32>
    %202 = arith.addf %125, %201 : vector<2x512xf32>
    %c0_64 = arith.constant 0 : index
    %c0_65 = arith.constant 0 : index
    %203 = vector.load %arg19[%c0_64, %c0_65] : memref<4x512xf32, #tpu.memory_space<vmem>>, vector<2x512xf32>
    tpu.vector_store %arg19[%c0_64, %c0_65], %202 {strides = array<i32>} : memref<4x512xf32, #tpu.memory_space<vmem>>, vector<2x512xf32>,
    %204 = vector.extract_strided_slice %0 {offsets = [2, 0], sizes = [2, 512], strides = [1, 1]} : vector<4x512xf32> to vector<2x512xf32>
    %205 = arith.addf %200, %204 : vector<2x512xf32>
    %c2 = arith.constant 2 : index
    %c0_66 = arith.constant 0 : index
    %206 = vector.load %arg19[%c2, %c0_66] : memref<4x512xf32, #tpu.memory_space<vmem>>, vector<2x512xf32>
    tpu.vector_store %arg19[%c2, %c0_66], %205 {strides = array<i32>} : memref<4x512xf32, #tpu.memory_space<vmem>>, vector<2x512xf32>,
    return
  }
  func.func @transform_0(%arg0: i32) -> (i32, i32) {
    %c0_i32 = arith.constant 0 : i32
    %c0_i32_0 = arith.constant 0 : i32
    %c0_i32_1 = arith.constant 0 : i32
    return %c0_i32, %c0_i32_0 : i32, i32
  }
  func.func @transform_1(%arg0: i32) -> (i32, i32) {
    %c0_i32 = arith.constant 0 : i32
    %c0_i32_0 = arith.constant 0 : i32
    %c0_i32_1 = arith.constant 0 : i32
    return %c0_i32, %c0_i32_0 : i32, i32
  }
  func.func @transform_2(%arg0: i32) -> (i32, i32) {
    %c0_i32 = arith.constant 0 : i32
    %c0_i32_0 = arith.constant 0 : i32
    %c0_i32_1 = arith.constant 0 : i32
    return %c0_i32, %c0_i32_0 : i32, i32
  }
  func.func @transform_3(%arg0: i32) -> (i32, i32) {
    %c0_i32 = arith.constant 0 : i32
    %c0_i32_0 = arith.constant 0 : i32
    %c0_i32_1 = arith.constant 0 : i32
    return %c0_i32, %c0_i32_0 : i32, i32
  }
  func.func @transform_4(%arg0: i32) -> (i32, i32) {
    %c0_i32 = arith.constant 0 : i32
    %c0_i32_0 = arith.constant 0 : i32
    %c0_i32_1 = arith.constant 0 : i32
    return %c0_i32, %c0_i32_0 : i32, i32
  }
  func.func @transform_5(%arg0: i32) -> (i32, i32) {
    %c0_i32 = arith.constant 0 : i32
    %c0_i32_0 = arith.constant 0 : i32
    %c0_i32_1 = arith.constant 0 : i32
    return %c0_i32, %c0_i32_0 : i32, i32
  }
  func.func @transform_6(%arg0: i32) -> (i32, i32) {
    %c0_i32 = arith.constant 0 : i32
    %c0_i32_0 = arith.constant 0 : i32
    %c0_i32_1 = arith.constant 0 : i32
    return %c0_i32, %c0_i32_0 : i32, i32
  }
  func.func @transform_7(%arg0: i32) -> (i32, i32) {
    %c0_i32 = arith.constant 0 : i32
    %c0_i32_0 = arith.constant 0 : i32
    %c0_i32_1 = arith.constant 0 : i32
    return %c0_i32, %c0_i32_0 : i32, i32
  }
  func.func @transform_8(%arg0: i32) -> (i32, i32) {
    %c0_i32 = arith.constant 0 : i32
    %c0_i32_0 = arith.constant 0 : i32
    %c0_i32_1 = arith.constant 0 : i32
    return %c0_i32, %c0_i32_0 : i32, i32
  }
  func.func @transform_9(%arg0: i32) -> (i32, i32) {
    %c0_i32 = arith.constant 0 : i32
    %c0_i32_0 = arith.constant 0 : i32
    %c0_i32_1 = arith.constant 0 : i32
    return %c0_i32, %c0_i32_0 : i32, i32
  }
  func.func @transform_10(%arg0: i32) -> (i32, i32) {
    %c0_i32 = arith.constant 0 : i32
    %c0_i32_0 = arith.constant 0 : i32
    %c0_i32_1 = arith.constant 0 : i32
    return %c0_i32, %c0_i32_0 : i32, i32
  }
  func.func @transform_11(%arg0: i32) -> (i32, i32) {
    %c0_i32 = arith.constant 0 : i32
    %c0_i32_0 = arith.constant 0 : i32
    %c0_i32_1 = arith.constant 0 : i32
    return %c0_i32, %c0_i32_0 : i32, i32
  }
  func.func @transform_12(%arg0: i32) -> (i32, i32) {
    %c0_i32 = arith.constant 0 : i32
    %c0_i32_0 = arith.constant 0 : i32
    %c0_i32_1 = arith.constant 0 : i32
    return %c0_i32, %c0_i32_0 : i32, i32
  }
  func.func @transform_13(%arg0: i32) -> (i32, i32) {
    %c0_i32 = arith.constant 0 : i32
    %c0_i32_0 = arith.constant 0 : i32
    %c0_i32_1 = arith.constant 0 : i32
    return %c0_i32, %c0_i32_0 : i32, i32
  }
  func.func @transform_14(%arg0: i32) -> (i32, i32) {
    %c0_i32 = arith.constant 0 : i32
    %c0_i32_0 = arith.constant 0 : i32
    %c0_i32_1 = arith.constant 0 : i32
    return %c0_i32, %c0_i32_0 : i32, i32
  }
  func.func @transform_15(%arg0: i32) -> (i32, i32) {
    %c0_i32 = arith.constant 0 : i32
    %c0_i32_0 = arith.constant 0 : i32
    %c0_i32_1 = arith.constant 0 : i32
    return %c0_i32, %c0_i32_0 : i32, i32
  }
  func.func @transform_16(%arg0: i32) -> (i32, i32) {
    %c0_i32 = arith.constant 0 : i32
    %c0_i32_0 = arith.constant 0 : i32
    %c0_i32_1 = arith.constant 0 : i32
    return %c0_i32, %c0_i32_0 : i32, i32
  }
  func.func @transform_17(%arg0: i32) -> (i32, i32) {
    %c0_i32 = arith.constant 0 : i32
    %c0_i32_0 = arith.constant 0 : i32
    %c0_i32_1 = arith.constant 0 : i32
    return %c0_i32, %c0_i32_0 : i32, i32
  }
  func.func @transform_18(%arg0: i32) -> (i32, i32) {
    %c0_i32 = arith.constant 0 : i32
    %c0_i32_0 = arith.constant 0 : i32
    %c0_i32_1 = arith.constant 0 : i32
    return %c0_i32, %c0_i32_0 : i32, i32
  }
}

</mosaic_0001>

<llo_original>
// kernel: tpu_custom_call.1
$region0: #{tpu_custom_call.1}
  #allocation0 [shape = 'u32[]', space=smem, size = 0x4, offset = 0x4, fixed_abs, tag = 'smem constant byte address 0x4 - core index']
  #allocation1 [shape = 'u32[72,128]{1,0:T(1,128)}', space=vmem, size = 0x9000, scoped, tag = 'internal scratch']
  %s0 = inlined_call_operand.vmem [shape: f32[4,512], index: 0, kind: input, shape index: {}]
  %s1 = inlined_call_operand.vmem [shape: f32[9,512], index: 1, kind: input, shape index: {}]
  %s2 = inlined_call_operand.vmem [shape: f32[512,2], index: 2, kind: input, shape index: {}]
  %s3 = inlined_call_operand.vmem [shape: f32[2,512], index: 3, kind: input, shape index: {}]
  %s4 = inlined_call_operand.vmem [shape: f32[16,4], index: 4, kind: input, shape index: {}]
  %s5 = inlined_call_operand.vmem [shape: f32[16,1], index: 5, kind: input, shape index: {}]
  %s6 = inlined_call_operand.vmem [shape: f32[16,9], index: 6, kind: input, shape index: {}]
  %s7 = inlined_call_operand.vmem [shape: f32[16,1], index: 7, kind: input, shape index: {}]
  %s8 = inlined_call_operand.vmem [shape: f32[2,16], index: 8, kind: input, shape index: {}]
  %s9 = inlined_call_operand.vmem [shape: f32[2,16], index: 9, kind: input, shape index: {}]
  %s10 = inlined_call_operand.vmem [shape: f32[2,1], index: 10, kind: input, shape index: {}]
  %s11 = inlined_call_operand.vmem [shape: f32[32,2], index: 11, kind: input, shape index: {}]
  %s12 = inlined_call_operand.vmem [shape: f32[32,1], index: 12, kind: input, shape index: {}]
  %s13 = inlined_call_operand.vmem [shape: f32[2,16], index: 13, kind: input, shape index: {}]
  %s14 = inlined_call_operand.vmem [shape: f32[2,16], index: 14, kind: input, shape index: {}]
  %s15 = inlined_call_operand.vmem [shape: f32[2,1], index: 15, kind: input, shape index: {}]
  %s16 = inlined_call_operand.vmem [shape: f32[2,9], index: 16, kind: input, shape index: {}]
  %s17 = inlined_call_operand.vmem [shape: f32[2,1], index: 17, kind: input, shape index: {}]
  %s18 = inlined_call_operand.hbm [shape: f32[4,512], index: 18, kind: output, shape index: {}]
  %s19 = sld [smem:[#allocation0]]
  $region82: #{tpu_custom_call.1} parent=0
    _
  %s21 = ssub.s32 1, %s19
  %s22 = scalar_select 0, %s21, %s19
  $region1: #{tpu_custom_call.1} parent=0
    #allocation2 [shape = 'u8[8192]{0}', space=vmem, size = 0x2000, scoped, tag = 'output window, operand 0, single buffered']
    #allocation3 [shape = 's32[1]{0}', space=sflag, size = 0x4, scoped, tag = 'scoped memory for tpu_custom_call.1']
    %23 = vsyncpa [#allocation3], 0
    // Predicated region
    $region2: #{tpu_custom_call.1} parent=1 // pred_check
      _
    $region3: #{tpu_custom_call.1} parent=1 // pred_check_branch
      %25 = sbr.rel (0) target = $region5
    $region4: #{tpu_custom_call.1} parent=1 // pred_region
      _
    $region5: #{tpu_custom_call.1} parent=1 // pred_fallthru
      _
    // Predicated region
    $region6: #{tpu_custom_call.1} parent=1 // pred_check
      _
    $region7: #{tpu_custom_call.1} parent=1 // pred_check_branch
      %27 = sbr.rel (0) target = $region9
    $region8: #{tpu_custom_call.1} parent=1 // pred_region
      _
    $region9: #{tpu_custom_call.1} parent=1 // pred_fallthru
      _
    // Predicated region
    $region10: #{tpu_custom_call.1} parent=1 // pred_check
      _
    $region11: #{tpu_custom_call.1} parent=1 // pred_check_branch
      %29 = sbr.rel (0) target = $region13
    $region12: #{tpu_custom_call.1} parent=1 // pred_region
      _
    $region13: #{tpu_custom_call.1} parent=1 // pred_fallthru
      _
    // Predicated region
    $region14: #{tpu_custom_call.1} parent=1 // pred_check
      _
    $region15: #{tpu_custom_call.1} parent=1 // pred_check_branch
      %31 = sbr.rel (0) target = $region17
    $region16: #{tpu_custom_call.1} parent=1 // pred_region
      _
    $region17: #{tpu_custom_call.1} parent=1 // pred_fallthru
      _
    // Predicated region
    $region18: #{tpu_custom_call.1} parent=1 // pred_check
      _
    $region19: #{tpu_custom_call.1} parent=1 // pred_check_branch
      %33 = sbr.rel (0) target = $region21
    $region20: #{tpu_custom_call.1} parent=1 // pred_region
      _
    $region21: #{tpu_custom_call.1} parent=1 // pred_fallthru
      _
    // Predicated region
    $region22: #{tpu_custom_call.1} parent=1 // pred_check
      _
    $region23: #{tpu_custom_call.1} parent=1 // pred_check_branch
      %35 = sbr.rel (0) target = $region25
    $region24: #{tpu_custom_call.1} parent=1 // pred_region
      _
    $region25: #{tpu_custom_call.1} parent=1 // pred_fallthru
      _
    // Predicated region
    $region26: #{tpu_custom_call.1} parent=1 // pred_check
      _
    $region27: #{tpu_custom_call.1} parent=1 // pred_check_branch
      %37 = sbr.rel (0) target = $region29
    $region28: #{tpu_custom_call.1} parent=1 // pred_region
      _
    $region29: #{tpu_custom_call.1} parent=1 // pred_fallthru
      _
    // Predicated region
    $region30: #{tpu_custom_call.1} parent=1 // pred_check
      _
    $region31: #{tpu_custom_call.1} parent=1 // pred_check_branch
      %39 = sbr.rel (0) target = $region33
    $region32: #{tpu_custom_call.1} parent=1 // pred_region
      _
    $region33: #{tpu_custom_call.1} parent=1 // pred_fallthru
      _
    // Predicated region
    $region34: #{tpu_custom_call.1} parent=1 // pred_check
      _
    $region35: #{tpu_custom_call.1} parent=1 // pred_check_branch
      %41 = sbr.rel (0) target = $region37
    $region36: #{tpu_custom_call.1} parent=1 // pred_region
      _
    $region37: #{tpu_custom_call.1} parent=1 // pred_fallthru
      _
    // Predicated region
    $region38: #{tpu_custom_call.1} parent=1 // pred_check
      _
    $region39: #{tpu_custom_call.1} parent=1 // pred_check_branch
      %43 = sbr.rel (0) target = $region41
    $region40: #{tpu_custom_call.1} parent=1 // pred_region
      _
    $region41: #{tpu_custom_call.1} parent=1 // pred_fallthru
      _
    // Predicated region
    $region42: #{tpu_custom_call.1} parent=1 // pred_check
      _
    $region43: #{tpu_custom_call.1} parent=1 // pred_check_branch
      %45 = sbr.rel (0) target = $region45
    $region44: #{tpu_custom_call.1} parent=1 // pred_region
      _
    $region45: #{tpu_custom_call.1} parent=1 // pred_fallthru
      _
    // Predicated region
    $region46: #{tpu_custom_call.1} parent=1 // pred_check
      _
    $region47: #{tpu_custom_call.1} parent=1 // pred_check_branch
      %47 = sbr.rel (0) target = $region49
    $region48: #{tpu_custom_call.1} parent=1 // pred_region
      _
    $region49: #{tpu_custom_call.1} parent=1 // pred_fallthru
      _
    // Predicated region
    $region50: #{tpu_custom_call.1} parent=1 // pred_check
      _
    $region51: #{tpu_custom_call.1} parent=1 // pred_check_branch
      %49 = sbr.rel (0) target = $region53
    $region52: #{tpu_custom_call.1} parent=1 // pred_region
      _
    $region53: #{tpu_custom_call.1} parent=1 // pred_fallthru
      _
    // Predicated region
    $region54: #{tpu_custom_call.1} parent=1 // pred_check
      _
    $region55: #{tpu_custom_call.1} parent=1 // pred_check_branch
      %51 = sbr.rel (0) target = $region57
    $region56: #{tpu_custom_call.1} parent=1 // pred_region
      _
    $region57: #{tpu_custom_call.1} parent=1 // pred_fallthru
      _
    // Predicated region
    $region58: #{tpu_custom_call.1} parent=1 // pred_check
      _
    $region59: #{tpu_custom_call.1} parent=1 // pred_check_branch
      %53 = sbr.rel (0) target = $region61
    $region60: #{tpu_custom_call.1} parent=1 // pred_region
      _
    $region61: #{tpu_custom_call.1} parent=1 // pred_fallthru
      _
    // Predicated region
    $region62: #{tpu_custom_call.1} parent=1 // pred_check
      _
    $region63: #{tpu_custom_call.1} parent=1 // pred_check_branch
      %55 = sbr.rel (0) target = $region65
    $region64: #{tpu_custom_call.1} parent=1 // pred_region
      _
    $region65: #{tpu_custom_call.1} parent=1 // pred_fallthru
      _
    // Predicated region
    $region66: #{tpu_custom_call.1} parent=1 // pred_check
      _
    $region67: #{tpu_custom_call.1} parent=1 // pred_check_branch
      %57 = sbr.rel (0) target = $region69
    $region68: #{tpu_custom_call.1} parent=1 // pred_region
      _
    $region69: #{tpu_custom_call.1} parent=1 // pred_fallthru
      _
    // Predicated region
    $region70: #{tpu_custom_call.1} parent=1 // pred_check
      _
    $region71: #{tpu_custom_call.1} parent=1 // pred_check_branch
      %59 = sbr.rel (0) target = $region73
    $region72: #{tpu_custom_call.1} parent=1 // pred_region
      _
    $region73: #{tpu_custom_call.1} parent=1 // pred_fallthru
      _
    %v60 = vld [vmem:[%s0] sm:$0xff]
    %v61 = vld [vmem:[%s0 + $0x8] sm:$0xff]
    %v62 = vld [vmem:[%s1] sm:$0xff]
    %v63 = vld [vmem:[%s1 + $0x8] sm:$0xff]
    %v64 = vld [vmem:[%s1 + $0x10] sm:$0xff]
    %v65 = vld [vmem:[%s1 + $0x18] sm:$0xff]
    %v66 = vld [vmem:[%s1 + $0x20] sm:$0x1]
    %v67 = vld [vmem:[%s1 + $0x28] sm:$0x1]
    %v68 = vld [vmem:[%s1 + $0x30] sm:$0x1]
    %v69 = vld [vmem:[%s1 + $0x38] sm:$0x1]
    %v70 = vld [vmem:[%s4] sm:$0xff]
    %v71 = vld [vmem:[%s4 + $0x8] sm:$0xff]
    %v72 = vld [vmem:[%s5] sm:$0xff]
    %v73 = vld [vmem:[%s5 + $0x8] sm:$0xff]
    %75 = vset.pattern.permute.xlu0 0
    %76 = vperm.xlu0 %75, %v72
    %v77 = vpop.permute.xlu0 %76
    %80 = vset.pattern.permute.xlu0 0
    %81 = vperm.xlu0 %80, %v73
    %v82 = vpop.permute.xlu0 %81
    %86 = vst [vmem:[#allocation1] ss:$2 sm:$0xff] %v60
    %s87 = scalar_lea.vmem [#allocation1], 16
    %88 = vst [vmem:[%s87] ss:$2 sm:$0xff] %v61
    %v89 = vld.sshfl [vmem:[#allocation1] sm:$0xff pattern:$0x75316420]
    %v90 = vld.sshfl [vmem:[#allocation1 + $0x8] sm:$0xff pattern:$0x75316420]
    %v91 = vld.sshfl [vmem:[#allocation1 + $0x10] sm:$0xff pattern:$0x75316420]
    %v92 = vld.sshfl [vmem:[#allocation1 + $0x18] sm:$0xff pattern:$0x75316420]
    %vm93 = vcmask 31744
    %v95 = vsel %vm93, %v70, 0
    %v98 = vsel %vm93, %v71, 0
    %vm100 = vcmask 1043456
    %v101 = vsel %vm100, %v89, 0
    %v103 = vsel %vm100, %v90, 0
    %v105 = vsel %vm100, %v91, 0
    %v107 = vsel %vm100, %v92, 0
    %109 = vmatpush.msra.mxu0 0.0
    %110 = vmatpush.msra.mxu0 0.0
    %111 = vmatpush.msra.mxu0 0.0
    %112 = vmatpush.msra.mxu0 0.0
    %113 = vmatpush.msra.mxu0 0.0
    %114 = vmatpush.msra.mxu0 0.0
    %115 = vmatpush.msra.mxu0 0.0
    %116 = vmatpush.msra.mxu0 0.0
    %117 = vmatpush.msra.mxu0 0.0
    %118 = vmatpush.msra.mxu0 0.0
    %119 = vmatpush.msra.mxu0 0.0
    %120 = vmatpush.msra.mxu0 0.0
    %121 = vmatpush.msra.mxu0 0.0
    %122 = vmatpush.msra.mxu0 0.0
    %123 = vmatpush.msra.mxu0 0.0
    %124 = vmatpush.msra.mxu0 %v101
    %125 = vmatmul.f32.gmra.mxu0 %v95
    %v126 = vpop.f32.mrf.mxu0
    %v127 = vadd.f32 %v77, %v126
    %128 = vmatmul.f32.gmra.mxu0 %v98
    %v129 = vpop.f32.mrf.mxu0
    %v130 = vadd.f32 %v82, %v129
    %131 = vdwg.mxu0
    %132 = vmatpush.msra.mxu0 0.0
    %133 = vmatpush.msra.mxu0 0.0
    %134 = vmatpush.msra.mxu0 0.0
    %135 = vmatpush.msra.mxu0 0.0
    %136 = vmatpush.msra.mxu0 0.0
    %137 = vmatpush.msra.mxu0 0.0
    %138 = vmatpush.msra.mxu0 0.0
    %139 = vmatpush.msra.mxu0 0.0
    %140 = vmatpush.msra.mxu0 0.0
    %141 = vmatpush.msra.mxu0 0.0
    %142 = vmatpush.msra.mxu0 0.0
    %143 = vmatpush.msra.mxu0 0.0
    %144 = vmatpush.msra.mxu0 0.0
    %145 = vmatpush.msra.mxu0 0.0
    %146 = vmatpush.msra.mxu0 0.0
    %147 = vmatpush.msra.mxu0 %v103
    %148 = vmatmul.f32.gmra.mxu0 %v95
    %v149 = vpop.f32.mrf.mxu0
    %v150 = vadd.f32 %v77, %v149
    %151 = vmatmul.f32.gmra.mxu0 %v98
    %v152 = vpop.f32.mrf.mxu0
    %v153 = vadd.f32 %v82, %v152
    %154 = vdwg.mxu0
    %155 = vmatpush.msra.mxu0 0.0
    %156 = vmatpush.msra.mxu0 0.0
    %157 = vmatpush.msra.mxu0 0.0
    %158 = vmatpush.msra.mxu0 0.0
    %159 = vmatpush.msra.mxu0 0.0
    %160 = vmatpush.msra.mxu0 0.0
    %161 = vmatpush.msra.mxu0 0.0
    %162 = vmatpush.msra.mxu0 0.0
    %163 = vmatpush.msra.mxu0 0.0
    %164 = vmatpush.msra.mxu0 0.0
    %165 = vmatpush.msra.mxu0 0.0
    %166 = vmatpush.msra.mxu0 0.0
    %167 = vmatpush.msra.mxu0 0.0
    %168 = vmatpush.msra.mxu0 0.0
    %169 = vmatpush.msra.mxu0 0.0
    %170 = vmatpush.msra.mxu0 %v105
    %171 = vmatmul.f32.gmra.mxu0 %v95
    %v172 = vpop.f32.mrf.mxu0
    %v173 = vadd.f32 %v77, %v172
    %174 = vmatmul.f32.gmra.mxu0 %v98
    %v175 = vpop.f32.mrf.mxu0
    %v176 = vadd.f32 %v82, %v175
    %177 = vdwg.mxu0
    %178 = vmatpush.msra.mxu0 0.0
    %179 = vmatpush.msra.mxu0 0.0
    %180 = vmatpush.msra.mxu0 0.0
    %181 = vmatpush.msra.mxu0 0.0
    %182 = vmatpush.msra.mxu0 0.0
    %183 = vmatpush.msra.mxu0 0.0
    %184 = vmatpush.msra.mxu0 0.0
    %185 = vmatpush.msra.mxu0 0.0
    %186 = vmatpush.msra.mxu0 0.0
    %187 = vmatpush.msra.mxu0 0.0
    %188 = vmatpush.msra.mxu0 0.0
    %189 = vmatpush.msra.mxu0 0.0
    %190 = vmatpush.msra.mxu0 0.0
    %191 = vmatpush.msra.mxu0 0.0
    %192 = vmatpush.msra.mxu0 0.0
    %193 = vmatpush.msra.mxu0 %v107
    %194 = vmatmul.f32.gmra.mxu0 %v95
    %v195 = vpop.f32.mrf.mxu0
    %v196 = vadd.f32 %v77, %v195
    %197 = vmatmul.f32.gmra.mxu0 %v98
    %v198 = vpop.f32.mrf.mxu0
    %v199 = vadd.f32 %v82, %v198
    %200 = vdwg.mxu0
    %v201 = vmax.f32 %v127, 0.0
    %v202 = vmax.f32 %v150, 0.0
    %v203 = vmax.f32 %v173, 0.0
    %v204 = vmax.f32 %v196, 0.0
    %v205 = vmax.f32 %v130, 0.0
    %v206 = vmax.f32 %v153, 0.0
    %v207 = vmax.f32 %v176, 0.0
    %v208 = vmax.f32 %v199, 0.0
    %v209 = vld [vmem:[%s6] sm:$0xff]
    %v210 = vld [vmem:[%s6 + $0x8] sm:$0xff]
    %v211 = vld [vmem:[%s7] sm:$0xff]
    %v212 = vld [vmem:[%s7 + $0x8] sm:$0xff]
    %213 = vrot.lane.b32.xlu0 %v201, 17
    %v214 = vpop.permute.xlu0 %213
    %215 = vrot.lane.b32.xlu0 %v205, 17
    %v216 = vpop.permute.xlu0 %215
    %217 = vrot.lane.b32.xlu0 %v202, 17
    %v218 = vpop.permute.xlu0 %217
    %219 = vrot.lane.b32.xlu0 %v206, 17
    %v220 = vpop.permute.xlu0 %219
    %221 = vrot.lane.b32.xlu0 %v203, 17
    %v222 = vpop.permute.xlu0 %221
    %223 = vrot.lane.b32.xlu0 %v207, 17
    %v224 = vpop.permute.xlu0 %223
    %225 = vrot.lane.b32.xlu0 %v204, 17
    %v226 = vpop.permute.xlu0 %225
    %227 = vrot.lane.b32.xlu0 %v208, 17
    %v228 = vpop.permute.xlu0 %227
    %v229 = vlaneseq
    %v230 = vand.u32 %v229, 127
    %vm231 = vcmp.lt.s32.totalorder %v230, 17
    %v232 = vsel %vm231, %v222, %v226
    %v233 = vsel %vm231, %v224, %v228
    %v234 = vsel %vm231, %v218, %v222
    %v235 = vsel %vm231, %v220, %v224
    %v236 = vsel %vm231, %v214, %v218
    %v237 = vsel %vm231, %v216, %v220
    %v238 = vsel %vm231, %v226, %v214
    %v239 = vsel %vm231, %v228, %v216
    %241 = vset.pattern.permute.xlu0 0
    %242 = vperm.xlu0 %241, %v209
    %v243 = vpop.permute.xlu0 %242
    %246 = vset.pattern.permute.xlu0 0
    %247 = vperm.xlu0 %246, %v210
    %v248 = vpop.permute.xlu0 %247
    %v250 = vmul.f32 %v238, %v243
    %v251 = vmul.f32 %v236, %v243
    %v252 = vmul.f32 %v234, %v243
    %v253 = vmul.f32 %v232, %v243
    %v254 = vmul.f32 %v239, %v248
    %v255 = vmul.f32 %v237, %v248
    %v256 = vmul.f32 %v235, %v248
    %v257 = vmul.f32 %v233, %v248
    %v258 = vperm.slane %v62, 0
    %v259 = vperm.slane %v63, 0
    %v260 = vperm.slane %v64, 0
    %v261 = vperm.slane %v65, 0
    %v262 = vmul.f32 %v250, %v258
    %v263 = vmul.f32 %v251, %v259
    %v264 = vmul.f32 %v252, %v260
    %v265 = vmul.f32 %v253, %v261
    %v266 = vmul.f32 %v254, %v258
    %v267 = vmul.f32 %v255, %v259
    %v268 = vmul.f32 %v256, %v260
    %v269 = vmul.f32 %v257, %v261
    %v270 = vadd.f32 %v262, 0.0
    %v271 = vadd.f32 %v263, 0.0
    %v272 = vadd.f32 %v264, 0.0
    %v273 = vadd.f32 %v265, 0.0
    %v274 = vadd.f32 %v266, 0.0
    %v275 = vadd.f32 %v267, 0.0
    %v276 = vadd.f32 %v268, 0.0
    %v277 = vadd.f32 %v269, 0.0
    %278 = vrot.lane.b32.xlu0 %v201, 16
    %v279 = vpop.permute.xlu0 %278
    %280 = vrot.lane.b32.xlu0 %v205, 16
    %v281 = vpop.permute.xlu0 %280
    %282 = vrot.lane.b32.xlu0 %v202, 16
    %v283 = vpop.permute.xlu0 %282
    %284 = vrot.lane.b32.xlu0 %v206, 16
    %v285 = vpop.permute.xlu0 %284
    %286 = vrot.lane.b32.xlu0 %v203, 16
    %v287 = vpop.permute.xlu0 %286
    %288 = vrot.lane.b32.xlu0 %v207, 16
    %v289 = vpop.permute.xlu0 %288
    %290 = vrot.lane.b32.xlu0 %v204, 16
    %v291 = vpop.permute.xlu0 %290
    %292 = vrot.lane.b32.xlu0 %v208, 16
    %v293 = vpop.permute.xlu0 %292
    %vm294 = vcmp.lt.s32.totalorder %v230, 16
    %v295 = vsel %vm294, %v287, %v291
    %v296 = vsel %vm294, %v289, %v293
    %v297 = vsel %vm294, %v283, %v287
    %v298 = vsel %vm294, %v285, %v289
    %v299 = vsel %vm294, %v279, %v283
    %v300 = vsel %vm294, %v281, %v285
    %v301 = vsel %vm294, %v291, %v279
    %v302 = vsel %vm294, %v293, %v281
    %303 = vset.pattern.permute.xlu0 1
    %304 = vperm.xlu0 %303, %v209
    %v305 = vpop.permute.xlu0 %304
    %307 = vset.pattern.permute.xlu0 1
    %308 = vperm.xlu0 %307, %v210
    %v309 = vpop.permute.xlu0 %308
    %v311 = vmul.f32 %v301, %v305
    %v312 = vmul.f32 %v299, %v305
    %v313 = vmul.f32 %v297, %v305
    %v314 = vmul.f32 %v295, %v305
    %v315 = vmul.f32 %v302, %v309
    %v316 = vmul.f32 %v300, %v309
    %v317 = vmul.f32 %v298, %v309
    %v318 = vmul.f32 %v296, %v309
    %v319 = vperm.slane %v62, 1
    %v320 = vperm.slane %v63, 1
    %v321 = vperm.slane %v64, 1
    %v322 = vperm.slane %v65, 1
    %v323 = vmul.f32 %v311, %v319
    %v324 = vmul.f32 %v312, %v320
    %v325 = vmul.f32 %v313, %v321
    %v326 = vmul.f32 %v314, %v322
    %v327 = vmul.f32 %v315, %v319
    %v328 = vmul.f32 %v316, %v320
    %v329 = vmul.f32 %v317, %v321
    %v330 = vmul.f32 %v318, %v322
    %v331 = vadd.f32 %v270, %v323
    %v332 = vadd.f32 %v271, %v324
    %v333 = vadd.f32 %v272, %v325
    %v334 = vadd.f32 %v273, %v326
    %v335 = vadd.f32 %v274, %v327
    %v336 = vadd.f32 %v275, %v328
    %v337 = vadd.f32 %v276, %v329
    %v338 = vadd.f32 %v277, %v330
    %339 = vrot.lane.b32.xlu0 %v201, 15
    %v340 = vpop.permute.xlu0 %339
    %341 = vrot.lane.b32.xlu0 %v205, 15
    %v342 = vpop.permute.xlu0 %341
    %343 = vrot.lane.b32.xlu0 %v202, 15
    %v344 = vpop.permute.xlu0 %343
    %345 = vrot.lane.b32.xlu0 %v206, 15
    %v346 = vpop.permute.xlu0 %345
    %347 = vrot.lane.b32.xlu0 %v203, 15
    %v348 = vpop.permute.xlu0 %347
    %349 = vrot.lane.b32.xlu0 %v207, 15
    %v350 = vpop.permute.xlu0 %349
    %351 = vrot.lane.b32.xlu0 %v204, 15
    %v352 = vpop.permute.xlu0 %351
    %353 = vrot.lane.b32.xlu0 %v208, 15
    %v354 = vpop.permute.xlu0 %353
    %vm355 = vcmp.lt.s32.totalorder %v230, 15
    %v356 = vsel %vm355, %v348, %v352
    %v357 = vsel %vm355, %v350, %v354
    %v358 = vsel %vm355, %v344, %v348
    %v359 = vsel %vm355, %v346, %v350
    %v360 = vsel %vm355, %v340, %v344
    %v361 = vsel %vm355, %v342, %v346
    %v362 = vsel %vm355, %v352, %v340
    %v363 = vsel %vm355, %v354, %v342
    %364 = vset.pattern.permute.xlu0 2
    %365 = vperm.xlu0 %364, %v209
    %v366 = vpop.permute.xlu0 %365
    %368 = vset.pattern.permute.xlu0 2
    %369 = vperm.xlu0 %368, %v210
    %v370 = vpop.permute.xlu0 %369
    %v372 = vmul.f32 %v362, %v366
    %v373 = vmul.f32 %v360, %v366
    %v374 = vmul.f32 %v358, %v366
    %v375 = vmul.f32 %v356, %v366
    %v376 = vmul.f32 %v363, %v370
    %v377 = vmul.f32 %v361, %v370
    %v378 = vmul.f32 %v359, %v370
    %v379 = vmul.f32 %v357, %v370
    %v380 = vperm.slane %v62, 2
    %v381 = vperm.slane %v63, 2
    %v382 = vperm.slane %v64, 2
    %v383 = vperm.slane %v65, 2
    %v384 = vmul.f32 %v372, %v380
    %v385 = vmul.f32 %v373, %v381
    %v386 = vmul.f32 %v374, %v382
    %v387 = vmul.f32 %v375, %v383
    %v388 = vmul.f32 %v376, %v380
    %v389 = vmul.f32 %v377, %v381
    %v390 = vmul.f32 %v378, %v382
    %v391 = vmul.f32 %v379, %v383
    %v392 = vadd.f32 %v331, %v384
    %v393 = vadd.f32 %v332, %v385
    %v394 = vadd.f32 %v333, %v386
    %v395 = vadd.f32 %v334, %v387
    %v396 = vadd.f32 %v335, %v388
    %v397 = vadd.f32 %v336, %v389
    %v398 = vadd.f32 %v337, %v390
    %v399 = vadd.f32 %v338, %v391
    %400 = vrot.lane.b32.xlu0 %v201, 1
    %v401 = vpop.permute.xlu0 %400
    %402 = vrot.lane.b32.xlu0 %v205, 1
    %v403 = vpop.permute.xlu0 %402
    %404 = vrot.lane.b32.xlu0 %v202, 1
    %v405 = vpop.permute.xlu0 %404
    %406 = vrot.lane.b32.xlu0 %v206, 1
    %v407 = vpop.permute.xlu0 %406
    %408 = vrot.lane.b32.xlu0 %v203, 1
    %v409 = vpop.permute.xlu0 %408
    %410 = vrot.lane.b32.xlu0 %v207, 1
    %v411 = vpop.permute.xlu0 %410
    %412 = vrot.lane.b32.xlu0 %v204, 1
    %v413 = vpop.permute.xlu0 %412
    %414 = vrot.lane.b32.xlu0 %v208, 1
    %v415 = vpop.permute.xlu0 %414
    %vm416 = vcmp.lt.s32.totalorder %v230, 1
    %v417 = vsel %vm416, %v409, %v413
    %v418 = vsel %vm416, %v411, %v415
    %v419 = vsel %vm416, %v405, %v409
    %v420 = vsel %vm416, %v407, %v411
    %v421 = vsel %vm416, %v401, %v405
    %v422 = vsel %vm416, %v403, %v407
    %v423 = vsel %vm416, %v413, %v401
    %v424 = vsel %vm416, %v415, %v403
    %425 = vset.pattern.permute.xlu0 3
    %426 = vperm.xlu0 %425, %v209
    %v427 = vpop.permute.xlu0 %426
    %429 = vset.pattern.permute.xlu0 3
    %430 = vperm.xlu0 %429, %v210
    %v431 = vpop.permute.xlu0 %430
    %v433 = vmul.f32 %v423, %v427
    %v434 = vmul.f32 %v421, %v427
    %v435 = vmul.f32 %v419, %v427
    %v436 = vmul.f32 %v417, %v427
    %v437 = vmul.f32 %v424, %v431
    %v438 = vmul.f32 %v422, %v431
    %v439 = vmul.f32 %v420, %v431
    %v440 = vmul.f32 %v418, %v431
    %v441 = vperm.slane %v62, 3
    %v442 = vperm.slane %v63, 3
    %v443 = vperm.slane %v64, 3
    %v444 = vperm.slane %v65, 3
    %v445 = vmul.f32 %v433, %v441
    %v446 = vmul.f32 %v434, %v442
    %v447 = vmul.f32 %v435, %v443
    %v448 = vmul.f32 %v436, %v444
    %v449 = vmul.f32 %v437, %v441
    %v450 = vmul.f32 %v438, %v442
    %v451 = vmul.f32 %v439, %v443
    %v452 = vmul.f32 %v440, %v444
    %v453 = vadd.f32 %v392, %v445
    %v454 = vadd.f32 %v393, %v446
    %v455 = vadd.f32 %v394, %v447
    %v456 = vadd.f32 %v395, %v448
    %v457 = vadd.f32 %v396, %v449
    %v458 = vadd.f32 %v397, %v450
    %v459 = vadd.f32 %v398, %v451
    %v460 = vadd.f32 %v399, %v452
    %461 = vset.pattern.permute.xlu0 4
    %462 = vperm.xlu0 %461, %v209
    %v463 = vpop.permute.xlu0 %462
    %465 = vset.pattern.permute.xlu0 4
    %466 = vperm.xlu0 %465, %v210
    %v467 = vpop.permute.xlu0 %466
    %v469 = vmul.f32 %v201, %v463
    %v470 = vmul.f32 %v202, %v463
    %v471 = vmul.f32 %v203, %v463
    %v472 = vmul.f32 %v204, %v463
    %v473 = vmul.f32 %v205, %v467
    %v474 = vmul.f32 %v206, %v467
    %v475 = vmul.f32 %v207, %v467
    %v476 = vmul.f32 %v208, %v467
    %v477 = vadd.f32 %v453, %v469
    %v478 = vadd.f32 %v454, %v470
    %v479 = vadd.f32 %v455, %v471
    %v480 = vadd.f32 %v456, %v472
    %v481 = vadd.f32 %v457, %v473
    %v482 = vadd.f32 %v458, %v474
    %v483 = vadd.f32 %v459, %v475
    %v484 = vadd.f32 %v460, %v476
    %485 = vrot.lane.b32.xlu0 %v201, 127
    %v486 = vpop.permute.xlu0 %485
    %487 = vrot.lane.b32.xlu0 %v205, 127
    %v488 = vpop.permute.xlu0 %487
    %489 = vrot.lane.b32.xlu0 %v202, 127
    %v490 = vpop.permute.xlu0 %489
    %491 = vrot.lane.b32.xlu0 %v206, 127
    %v492 = vpop.permute.xlu0 %491
    %493 = vrot.lane.b32.xlu0 %v203, 127
    %v494 = vpop.permute.xlu0 %493
    %495 = vrot.lane.b32.xlu0 %v207, 127
    %v496 = vpop.permute.xlu0 %495
    %497 = vrot.lane.b32.xlu0 %v204, 127
    %v498 = vpop.permute.xlu0 %497
    %499 = vrot.lane.b32.xlu0 %v208, 127
    %v500 = vpop.permute.xlu0 %499
    %vm501 = vcmp.lt.s32.totalorder %v230, 127
    %v502 = vsel %vm501, %v494, %v498
    %v503 = vsel %vm501, %v496, %v500
    %v504 = vsel %vm501, %v490, %v494
    %v505 = vsel %vm501, %v492, %v496
    %v506 = vsel %vm501, %v486, %v490
    %v507 = vsel %vm501, %v488, %v492
    %v508 = vsel %vm501, %v498, %v486
    %v509 = vsel %vm501, %v500, %v488
    %510 = vset.pattern.permute.xlu0 5
    %511 = vperm.xlu0 %510, %v209
    %v512 = vpop.permute.xlu0 %511
    %514 = vset.pattern.permute.xlu0 5
    %515 = vperm.xlu0 %514, %v210
    %v516 = vpop.permute.xlu0 %515
    %v518 = vmul.f32 %v506, %v512
    %v519 = vmul.f32 %v504, %v512
    %v520 = vmul.f32 %v502, %v512
    %v521 = vmul.f32 %v508, %v512
    %v522 = vmul.f32 %v507, %v516
    %v523 = vmul.f32 %v505, %v516
    %v524 = vmul.f32 %v503, %v516
    %v525 = vmul.f32 %v509, %v516
    %v526 = vperm.slane %v62, 5
    %v527 = vperm.slane %v63, 5
    %v528 = vperm.slane %v64, 5
    %v529 = vperm.slane %v65, 5
    %v530 = vmul.f32 %v518, %v526
    %v531 = vmul.f32 %v519, %v527
    %v532 = vmul.f32 %v520, %v528
    %v533 = vmul.f32 %v521, %v529
    %v534 = vmul.f32 %v522, %v526
    %v535 = vmul.f32 %v523, %v527
    %v536 = vmul.f32 %v524, %v528
    %v537 = vmul.f32 %v525, %v529
    %v538 = vadd.f32 %v477, %v530
    %v539 = vadd.f32 %v478, %v531
    %v540 = vadd.f32 %v479, %v532
    %v541 = vadd.f32 %v480, %v533
    %v542 = vadd.f32 %v481, %v534
    %v543 = vadd.f32 %v482, %v535
    %v544 = vadd.f32 %v483, %v536
    %v545 = vadd.f32 %v484, %v537
    %546 = vrot.lane.b32.xlu0 %v201, 113
    %v547 = vpop.permute.xlu0 %546
    %548 = vrot.lane.b32.xlu0 %v205, 113
    %v549 = vpop.permute.xlu0 %548
    %550 = vrot.lane.b32.xlu0 %v202, 113
    %v551 = vpop.permute.xlu0 %550
    %552 = vrot.lane.b32.xlu0 %v206, 113
    %v553 = vpop.permute.xlu0 %552
    %554 = vrot.lane.b32.xlu0 %v203, 113
    %v555 = vpop.permute.xlu0 %554
    %556 = vrot.lane.b32.xlu0 %v207, 113
    %v557 = vpop.permute.xlu0 %556
    %558 = vrot.lane.b32.xlu0 %v204, 113
    %v559 = vpop.permute.xlu0 %558
    %560 = vrot.lane.b32.xlu0 %v208, 113
    %v561 = vpop.permute.xlu0 %560
    %vm562 = vcmp.lt.s32.totalorder %v230, 113
    %v563 = vsel %vm562, %v555, %v559
    %v564 = vsel %vm562, %v557, %v561
    %v565 = vsel %vm562, %v551, %v555
    %v566 = vsel %vm562, %v553, %v557
    %v567 = vsel %vm562, %v547, %v551
    %v568 = vsel %vm562, %v549, %v553
    %v569 = vsel %vm562, %v559, %v547
    %v570 = vsel %vm562, %v561, %v549
    %571 = vset.pattern.permute.xlu0 6
    %572 = vperm.xlu0 %571, %v209
    %v573 = vpop.permute.xlu0 %572
    %575 = vset.pattern.permute.xlu0 6
    %576 = vperm.xlu0 %575, %v210
    %v577 = vpop.permute.xlu0 %576
    %v579 = vmul.f32 %v567, %v573
    %v580 = vmul.f32 %v565, %v573
    %v581 = vmul.f32 %v563, %v573
    %v582 = vmul.f32 %v569, %v573
    %v583 = vmul.f32 %v568, %v577
    %v584 = vmul.f32 %v566, %v577
    %v585 = vmul.f32 %v564, %v577
    %v586 = vmul.f32 %v570, %v577
    %v587 = vperm.slane %v62, 6
    %v588 = vperm.slane %v63, 6
    %v589 = vperm.slane %v64, 6
    %v590 = vperm.slane %v65, 6
    %v591 = vmul.f32 %v579, %v587
    %v592 = vmul.f32 %v580, %v588
    %v593 = vmul.f32 %v581, %v589
    %v594 = vmul.f32 %v582, %v590
    %v595 = vmul.f32 %v583, %v587
    %v596 = vmul.f32 %v584, %v588
    %v597 = vmul.f32 %v585, %v589
    %v598 = vmul.f32 %v586, %v590
    %v599 = vadd.f32 %v538, %v591
    %v600 = vadd.f32 %v539, %v592
    %v601 = vadd.f32 %v540, %v593
    %v602 = vadd.f32 %v541, %v594
    %v603 = vadd.f32 %v542, %v595
    %v604 = vadd.f32 %v543, %v596
    %v605 = vadd.f32 %v544, %v597
    %v606 = vadd.f32 %v545, %v598
    %607 = vrot.lane.b32.xlu0 %v201, 112
    %v608 = vpop.permute.xlu0 %607
    %609 = vrot.lane.b32.xlu0 %v205, 112
    %v610 = vpop.permute.xlu0 %609
    %611 = vrot.lane.b32.xlu0 %v202, 112
    %v612 = vpop.permute.xlu0 %611
    %613 = vrot.lane.b32.xlu0 %v206, 112
    %v614 = vpop.permute.xlu0 %613
    %615 = vrot.lane.b32.xlu0 %v203, 112
    %v616 = vpop.permute.xlu0 %615
    %617 = vrot.lane.b32.xlu0 %v207, 112
    %v618 = vpop.permute.xlu0 %617
    %619 = vrot.lane.b32.xlu0 %v204, 112
    %v620 = vpop.permute.xlu0 %619
    %621 = vrot.lane.b32.xlu0 %v208, 112
    %v622 = vpop.permute.xlu0 %621
    %vm623 = vcmp.lt.s32.totalorder %v230, 112
    %v624 = vsel %vm623, %v616, %v620
    %v625 = vsel %vm623, %v618, %v622
    %v626 = vsel %vm623, %v612, %v616
    %v627 = vsel %vm623, %v614, %v618
    %v628 = vsel %vm623, %v608, %v612
    %v629 = vsel %vm623, %v610, %v614
    %v630 = vsel %vm623, %v620, %v608
    %v631 = vsel %vm623, %v622, %v610
    %632 = vset.pattern.permute.xlu0 7
    %633 = vperm.xlu0 %632, %v209
    %v634 = vpop.permute.xlu0 %633
    %636 = vset.pattern.permute.xlu0 7
    %637 = vperm.xlu0 %636, %v210
    %v638 = vpop.permute.xlu0 %637
    %v640 = vmul.f32 %v628, %v634
    %v641 = vmul.f32 %v626, %v634
    %v642 = vmul.f32 %v624, %v634
    %v643 = vmul.f32 %v630, %v634
    %v644 = vmul.f32 %v629, %v638
    %v645 = vmul.f32 %v627, %v638
    %v646 = vmul.f32 %v625, %v638
    %v647 = vmul.f32 %v631, %v638
    %v648 = vperm.slane %v62, 7
    %v649 = vperm.slane %v63, 7
    %v650 = vperm.slane %v64, 7
    %v651 = vperm.slane %v65, 7
    %v652 = vmul.f32 %v640, %v648
    %v653 = vmul.f32 %v641, %v649
    %v654 = vmul.f32 %v642, %v650
    %v655 = vmul.f32 %v643, %v651
    %v656 = vmul.f32 %v644, %v648
    %v657 = vmul.f32 %v645, %v649
    %v658 = vmul.f32 %v646, %v650
    %v659 = vmul.f32 %v647, %v651
    %v660 = vadd.f32 %v599, %v652
    %v661 = vadd.f32 %v600, %v653
    %v662 = vadd.f32 %v601, %v654
    %v663 = vadd.f32 %v602, %v655
    %v664 = vadd.f32 %v603, %v656
    %v665 = vadd.f32 %v604, %v657
    %v666 = vadd.f32 %v605, %v658
    %v667 = vadd.f32 %v606, %v659
    %668 = vrot.lane.b32.xlu0 %v201, 111
    %v669 = vpop.permute.xlu0 %668
    %670 = vrot.lane.b32.xlu0 %v205, 111
    %v671 = vpop.permute.xlu0 %670
    %672 = vrot.lane.b32.xlu0 %v202, 111
    %v673 = vpop.permute.xlu0 %672
    %674 = vrot.lane.b32.xlu0 %v206, 111
    %v675 = vpop.permute.xlu0 %674
    %676 = vrot.lane.b32.xlu0 %v203, 111
    %v677 = vpop.permute.xlu0 %676
    %678 = vrot.lane.b32.xlu0 %v207, 111
    %v679 = vpop.permute.xlu0 %678
    %680 = vrot.lane.b32.xlu0 %v204, 111
    %v681 = vpop.permute.xlu0 %680
    %682 = vrot.lane.b32.xlu0 %v208, 111
    %v683 = vpop.permute.xlu0 %682
    %vm684 = vcmp.lt.s32.totalorder %v230, 111
    %v685 = vsel %vm684, %v677, %v681
    %v686 = vsel %vm684, %v679, %v683
    %v687 = vsel %vm684, %v673, %v677
    %v688 = vsel %vm684, %v675, %v679
    %v689 = vsel %vm684, %v669, %v673
    %v690 = vsel %vm684, %v671, %v675
    %v691 = vsel %vm684, %v681, %v669
    %v692 = vsel %vm684, %v683, %v671
    %693 = vset.pattern.permute.xlu0 8
    %694 = vperm.xlu0 %693, %v209
    %v695 = vpop.permute.xlu0 %694
    %697 = vset.pattern.permute.xlu0 8
    %698 = vperm.xlu0 %697, %v210
    %v699 = vpop.permute.xlu0 %698
    %v701 = vmul.f32 %v689, %v695
    %v702 = vmul.f32 %v687, %v695
    %v703 = vmul.f32 %v685, %v695
    %v704 = vmul.f32 %v691, %v695
    %v705 = vmul.f32 %v690, %v699
    %v706 = vmul.f32 %v688, %v699
    %v707 = vmul.f32 %v686, %v699
    %v708 = vmul.f32 %v692, %v699
    %v709 = vperm.slane %v66, 0
    %v710 = vperm.slane %v67, 0
    %v711 = vperm.slane %v68, 0
    %v712 = vperm.slane %v69, 0
    %v713 = vmul.f32 %v701, %v709
    %v714 = vmul.f32 %v702, %v710
    %v715 = vmul.f32 %v703, %v711
    %v716 = vmul.f32 %v704, %v712
    %v717 = vmul.f32 %v705, %v709
    %v718 = vmul.f32 %v706, %v710
    %v719 = vmul.f32 %v707, %v711
    %v720 = vmul.f32 %v708, %v712
    %v721 = vadd.f32 %v660, %v713
    %v722 = vadd.f32 %v661, %v714
    %v723 = vadd.f32 %v662, %v715
    %v724 = vadd.f32 %v663, %v716
    %v725 = vadd.f32 %v664, %v717
    %v726 = vadd.f32 %v665, %v718
    %v727 = vadd.f32 %v666, %v719
    %v728 = vadd.f32 %v667, %v720
    %730 = vset.pattern.permute.xlu0 0
    %731 = vperm.xlu0 %730, %v211
    %v732 = vpop.permute.xlu0 %731
    %735 = vset.pattern.permute.xlu0 0
    %736 = vperm.xlu0 %735, %v212
    %v737 = vpop.permute.xlu0 %736
    %v739 = vadd.f32 %v721, %v732
    %v740 = vadd.f32 %v722, %v732
    %v741 = vadd.f32 %v723, %v732
    %v742 = vadd.f32 %v724, %v732
    %v743 = vadd.f32 %v725, %v737
    %v744 = vadd.f32 %v726, %v737
    %v745 = vadd.f32 %v727, %v737
    %v746 = vadd.f32 %v728, %v737
    %v747 = vmax.f32 %v739, 0.0
    %v748 = vmax.f32 %v740, 0.0
    %v749 = vmax.f32 %v741, 0.0
    %v750 = vmax.f32 %v742, 0.0
    %v751 = vmax.f32 %v743, 0.0
    %v752 = vmax.f32 %v744, 0.0
    %v753 = vmax.f32 %v745, 0.0
    %v754 = vmax.f32 %v746, 0.0
    %v755 = vld [vmem:[%s2] sm:$0xff]
    %v756 = vld [vmem:[%s2 + $0x8] sm:$0xff]
    %v757 = vld [vmem:[%s2 + $0x10] sm:$0xff]
    %v758 = vld [vmem:[%s2 + $0x18] sm:$0xff]
    %v759 = vld [vmem:[%s2 + $0x20] sm:$0xff]
    %v760 = vld [vmem:[%s2 + $0x28] sm:$0xff]
    %v761 = vld [vmem:[%s2 + $0x30] sm:$0xff]
    %v762 = vld [vmem:[%s2 + $0x38] sm:$0xff]
    %v763 = vld [vmem:[%s2 + $0x40] sm:$0xff]
    %v764 = vld [vmem:[%s2 + $0x48] sm:$0xff]
    %v765 = vld [vmem:[%s2 + $0x50] sm:$0xff]
    %v766 = vld [vmem:[%s2 + $0x58] sm:$0xff]
    %v767 = vld [vmem:[%s2 + $0x60] sm:$0xff]
    %v768 = vld [vmem:[%s2 + $0x68] sm:$0xff]
    %v769 = vld [vmem:[%s2 + $0x70] sm:$0xff]
    %v770 = vld [vmem:[%s2 + $0x78] sm:$0xff]
    %v771 = vld [vmem:[%s2 + $0x80] sm:$0xff]
    %v772 = vld [vmem:[%s2 + $0x88] sm:$0xff]
    %v773 = vld [vmem:[%s2 + $0x90] sm:$0xff]
    %v774 = vld [vmem:[%s2 + $0x98] sm:$0xff]
    %v775 = vld [vmem:[%s2 + $0xa0] sm:$0xff]
    %v776 = vld [vmem:[%s2 + $0xa8] sm:$0xff]
    %v777 = vld [vmem:[%s2 + $0xb0] sm:$0xff]
    %v778 = vld [vmem:[%s2 + $0xb8] sm:$0xff]
    %v779 = vld [vmem:[%s2 + $0xc0] sm:$0xff]
    %v780 = vld [vmem:[%s2 + $0xc8] sm:$0xff]
    %v781 = vld [vmem:[%s2 + $0xd0] sm:$0xff]
    %v782 = vld [vmem:[%s2 + $0xd8] sm:$0xff]
    %v783 = vld [vmem:[%s2 + $0xe0] sm:$0xff]
    %v784 = vld [vmem:[%s2 + $0xe8] sm:$0xff]
    %v785 = vld [vmem:[%s2 + $0xf0] sm:$0xff]
    %v786 = vld [vmem:[%s2 + $0xf8] sm:$0xff]
    %v787 = vld [vmem:[%s2 + $0x100] sm:$0xff]
    %v788 = vld [vmem:[%s2 + $0x108] sm:$0xff]
    %v789 = vld [vmem:[%s2 + $0x110] sm:$0xff]
    %v790 = vld [vmem:[%s2 + $0x118] sm:$0xff]
    %v791 = vld [vmem:[%s2 + $0x120] sm:$0xff]
    %v792 = vld [vmem:[%s2 + $0x128] sm:$0xff]
    %v793 = vld [vmem:[%s2 + $0x130] sm:$0xff]
    %v794 = vld [vmem:[%s2 + $0x138] sm:$0xff]
    %v795 = vld [vmem:[%s2 + $0x140] sm:$0xff]
    %v796 = vld [vmem:[%s2 + $0x148] sm:$0xff]
    %v797 = vld [vmem:[%s2 + $0x150] sm:$0xff]
    %v798 = vld [vmem:[%s2 + $0x158] sm:$0xff]
    %v799 = vld [vmem:[%s2 + $0x160] sm:$0xff]
    %v800 = vld [vmem:[%s2 + $0x168] sm:$0xff]
    %v801 = vld [vmem:[%s2 + $0x170] sm:$0xff]
    %v802 = vld [vmem:[%s2 + $0x178] sm:$0xff]
    %v803 = vld [vmem:[%s2 + $0x180] sm:$0xff]
    %v804 = vld [vmem:[%s2 + $0x188] sm:$0xff]
    %v805 = vld [vmem:[%s2 + $0x190] sm:$0xff]
    %v806 = vld [vmem:[%s2 + $0x198] sm:$0xff]
    %v807 = vld [vmem:[%s2 + $0x1a0] sm:$0xff]
    %v808 = vld [vmem:[%s2 + $0x1a8] sm:$0xff]
    %v809 = vld [vmem:[%s2 + $0x1b0] sm:$0xff]
    %v810 = vld [vmem:[%s2 + $0x1b8] sm:$0xff]
    %v811 = vld [vmem:[%s2 + $0x1c0] sm:$0xff]
    %v812 = vld [vmem:[%s2 + $0x1c8] sm:$0xff]
    %v813 = vld [vmem:[%s2 + $0x1d0] sm:$0xff]
    %v814 = vld [vmem:[%s2 + $0x1d8] sm:$0xff]
    %v815 = vld [vmem:[%s2 + $0x1e0] sm:$0xff]
    %v816 = vld [vmem:[%s2 + $0x1e8] sm:$0xff]
    %v817 = vld [vmem:[%s2 + $0x1f0] sm:$0xff]
    %v818 = vld [vmem:[%s2 + $0x1f8] sm:$0xff]
    %819 = vmatpush.msra.mxu0 %v770
    %820 = vmatpush.msra.mxu0 %v769
    %821 = vmatpush.msra.mxu0 %v768
    %822 = vmatpush.msra.mxu0 %v767
    %823 = vmatpush.msra.mxu0 %v766
    %824 = vmatpush.msra.mxu0 %v765
    %825 = vmatpush.msra.mxu0 %v764
    %826 = vmatpush.msra.mxu0 %v763
    %827 = vmatpush.msra.mxu0 %v762
    %828 = vmatpush.msra.mxu0 %v761
    %829 = vmatpush.msra.mxu0 %v760
    %830 = vmatpush.msra.mxu0 %v759
    %831 = vmatpush.msra.mxu0 %v758
    %832 = vmatpush.msra.mxu0 %v757
    %833 = vmatpush.msra.mxu0 %v756
    %834 = vmatpush.msra.mxu0 %v755
    %835 = vmatmul.f32.gmra.mxu0 %v201
    %v836 = vpop.f32.mrf.mxu0
    %v837 = vadd.f32 0.0, %v836
    %838 = vmatmul.f32.gmra.mxu0 %v205
    %v839 = vpop.f32.mrf.mxu0
    %v840 = vadd.f32 0.0, %v839
    %841 = vdwg.mxu0
    %842 = vmatpush.msra.mxu0 %v786
    %843 = vmatpush.msra.mxu0 %v785
    %844 = vmatpush.msra.mxu0 %v784
    %845 = vmatpush.msra.mxu0 %v783
    %846 = vmatpush.msra.mxu0 %v782
    %847 = vmatpush.msra.mxu0 %v781
    %848 = vmatpush.msra.mxu0 %v780
    %849 = vmatpush.msra.mxu0 %v779
    %850 = vmatpush.msra.mxu0 %v778
    %851 = vmatpush.msra.mxu0 %v777
    %852 = vmatpush.msra.mxu0 %v776
    %853 = vmatpush.msra.mxu0 %v775
    %854 = vmatpush.msra.mxu0 %v774
    %855 = vmatpush.msra.mxu0 %v773
    %856 = vmatpush.msra.mxu0 %v772
    %857 = vmatpush.msra.mxu0 %v771
    %858 = vmatmul.f32.gmra.mxu0 %v202
    %v859 = vpop.f32.mrf.mxu0
    %v860 = vadd.f32 %v837, %v859
    %861 = vmatmul.f32.gmra.mxu0 %v206
    %v862 = vpop.f32.mrf.mxu0
    %v863 = vadd.f32 %v840, %v862
    %864 = vdwg.mxu0
    %865 = vmatpush.msra.mxu0 %v802
    %866 = vmatpush.msra.mxu0 %v801
    %867 = vmatpush.msra.mxu0 %v800
    %868 = vmatpush.msra.mxu0 %v799
    %869 = vmatpush.msra.mxu0 %v798
    %870 = vmatpush.msra.mxu0 %v797
    %871 = vmatpush.msra.mxu0 %v796
    %872 = vmatpush.msra.mxu0 %v795
    %873 = vmatpush.msra.mxu0 %v794
    %874 = vmatpush.msra.mxu0 %v793
    %875 = vmatpush.msra.mxu0 %v792
    %876 = vmatpush.msra.mxu0 %v791
    %877 = vmatpush.msra.mxu0 %v790
    %878 = vmatpush.msra.mxu0 %v789
    %879 = vmatpush.msra.mxu0 %v788
    %880 = vmatpush.msra.mxu0 %v787
    %881 = vmatmul.f32.gmra.mxu0 %v203
    %v882 = vpop.f32.mrf.mxu0
    %v883 = vadd.f32 %v860, %v882
    %884 = vmatmul.f32.gmra.mxu0 %v207
    %v885 = vpop.f32.mrf.mxu0
    %v886 = vadd.f32 %v863, %v885
    %887 = vdwg.mxu0
    %888 = vmatpush.msra.mxu0 %v818
    %889 = vmatpush.msra.mxu0 %v817
    %890 = vmatpush.msra.mxu0 %v816
    %891 = vmatpush.msra.mxu0 %v815
    %892 = vmatpush.msra.mxu0 %v814
    %893 = vmatpush.msra.mxu0 %v813
    %894 = vmatpush.msra.mxu0 %v812
    %895 = vmatpush.msra.mxu0 %v811
    %896 = vmatpush.msra.mxu0 %v810
    %897 = vmatpush.msra.mxu0 %v809
    %898 = vmatpush.msra.mxu0 %v808
    %899 = vmatpush.msra.mxu0 %v807
    %900 = vmatpush.msra.mxu0 %v806
    %901 = vmatpush.msra.mxu0 %v805
    %902 = vmatpush.msra.mxu0 %v804
    %903 = vmatpush.msra.mxu0 %v803
    %904 = vmatmul.f32.gmra.mxu0 %v204
    %v905 = vpop.f32.mrf.mxu0
    %v906 = vadd.f32 %v883, %v905
    %907 = vmatmul.f32.gmra.mxu0 %v208
    %v908 = vpop.f32.mrf.mxu0
    %v909 = vadd.f32 %v886, %v908
    %910 = vdwg.mxu0
    %911 = vmatpush.msra.mxu0 %v770
    %912 = vmatpush.msra.mxu0 %v769
    %913 = vmatpush.msra.mxu0 %v768
    %914 = vmatpush.msra.mxu0 %v767
    %915 = vmatpush.msra.mxu0 %v766
    %916 = vmatpush.msra.mxu0 %v765
    %917 = vmatpush.msra.mxu0 %v764
    %918 = vmatpush.msra.mxu0 %v763
    %919 = vmatpush.msra.mxu0 %v762
    %920 = vmatpush.msra.mxu0 %v761
    %921 = vmatpush.msra.mxu0 %v760
    %922 = vmatpush.msra.mxu0 %v759
    %923 = vmatpush.msra.mxu0 %v758
    %924 = vmatpush.msra.mxu0 %v757
    %925 = vmatpush.msra.mxu0 %v756
    %926 = vmatpush.msra.mxu0 %v755
    %927 = vmatmul.f32.gmra.mxu0 %v747
    %v928 = vpop.f32.mrf.mxu0
    %v929 = vadd.f32 0.0, %v928
    %930 = vmatmul.f32.gmra.mxu0 %v751
    %v931 = vpop.f32.mrf.mxu0
    %v932 = vadd.f32 0.0, %v931
    %933 = vdwg.mxu0
    %934 = vmatpush.msra.mxu0 %v786
    %935 = vmatpush.msra.mxu0 %v785
    %936 = vmatpush.msra.mxu0 %v784
    %937 = vmatpush.msra.mxu0 %v783
    %938 = vmatpush.msra.mxu0 %v782
    %939 = vmatpush.msra.mxu0 %v781
    %940 = vmatpush.msra.mxu0 %v780
    %941 = vmatpush.msra.mxu0 %v779
    %942 = vmatpush.msra.mxu0 %v778
    %943 = vmatpush.msra.mxu0 %v777
    %944 = vmatpush.msra.mxu0 %v776
    %945 = vmatpush.msra.mxu0 %v775
    %946 = vmatpush.msra.mxu0 %v774
    %947 = vmatpush.msra.mxu0 %v773
    %948 = vmatpush.msra.mxu0 %v772
    %949 = vmatpush.msra.mxu0 %v771
    %950 = vmatmul.f32.gmra.mxu0 %v748
    %v951 = vpop.f32.mrf.mxu0
    %v952 = vadd.f32 %v929, %v951
    %953 = vmatmul.f32.gmra.mxu0 %v752
    %v954 = vpop.f32.mrf.mxu0
    %v955 = vadd.f32 %v932, %v954
    %956 = vdwg.mxu0
    %957 = vmatpush.msra.mxu0 %v802
    %958 = vmatpush.msra.mxu0 %v801
    %959 = vmatpush.msra.mxu0 %v800
    %960 = vmatpush.msra.mxu0 %v799
    %961 = vmatpush.msra.mxu0 %v798
    %962 = vmatpush.msra.mxu0 %v797
    %963 = vmatpush.msra.mxu0 %v796
    %964 = vmatpush.msra.mxu0 %v795
    %965 = vmatpush.msra.mxu0 %v794
    %966 = vmatpush.msra.mxu0 %v793
    %967 = vmatpush.msra.mxu0 %v792
    %968 = vmatpush.msra.mxu0 %v791
    %969 = vmatpush.msra.mxu0 %v790
    %970 = vmatpush.msra.mxu0 %v789
    %971 = vmatpush.msra.mxu0 %v788
    %972 = vmatpush.msra.mxu0 %v787
    %973 = vmatmul.f32.gmra.mxu0 %v749
    %v974 = vpop.f32.mrf.mxu0
    %v975 = vadd.f32 %v952, %v974
    %976 = vmatmul.f32.gmra.mxu0 %v753
    %v977 = vpop.f32.mrf.mxu0
    %v978 = vadd.f32 %v955, %v977
    %979 = vdwg.mxu0
    %980 = vmatpush.msra.mxu0 %v818
    %981 = vmatpush.msra.mxu0 %v817
    %982 = vmatpush.msra.mxu0 %v816
    %983 = vmatpush.msra.mxu0 %v815
    %984 = vmatpush.msra.mxu0 %v814
    %985 = vmatpush.msra.mxu0 %v813
    %986 = vmatpush.msra.mxu0 %v812
    %987 = vmatpush.msra.mxu0 %v811
    %988 = vmatpush.msra.mxu0 %v810
    %989 = vmatpush.msra.mxu0 %v809
    %990 = vmatpush.msra.mxu0 %v808
    %991 = vmatpush.msra.mxu0 %v807
    %992 = vmatpush.msra.mxu0 %v806
    %993 = vmatpush.msra.mxu0 %v805
    %994 = vmatpush.msra.mxu0 %v804
    %995 = vmatpush.msra.mxu0 %v803
    %996 = vmatmul.f32.gmra.mxu0 %v750
    %v997 = vpop.f32.mrf.mxu0
    %v998 = vadd.f32 %v975, %v997
    %999 = vmatmul.f32.gmra.mxu0 %v754
    %v1000 = vpop.f32.mrf.mxu0
    %v1001 = vadd.f32 %v978, %v1000
    %1002 = vdwg.mxu0
    %v1003 = vld [vmem:[%s8] sm:$0x3]
    %v1004 = vld [vmem:[%s9] sm:$0x3]
    %vm1005 = vcmask 130048
    %v1007 = vsel %vm1005, %v1004, 0
    %1009 = vmatpush.msra.mxu0 0.0
    %1010 = vmatpush.msra.mxu0 0.0
    %1011 = vmatpush.msra.mxu0 0.0
    %1012 = vmatpush.msra.mxu0 0.0
    %1013 = vmatpush.msra.mxu0 0.0
    %1014 = vmatpush.msra.mxu0 0.0
    %1015 = vmatpush.msra.mxu0 0.0
    %1016 = vmatpush.msra.mxu0 0.0
    %1017 = vmatpush.msra.mxu0 0.0
    %1018 = vmatpush.msra.mxu0 0.0
    %1019 = vmatpush.msra.mxu0 0.0
    %1020 = vmatpush.msra.mxu0 0.0
    %1021 = vmatpush.msra.mxu0 0.0
    %1022 = vmatpush.msra.mxu0 0.0
    %1023 = vmatpush.msra.mxu0 %v1001
    %1024 = vmatpush.msra.mxu0 %v998
    %1025 = vmatmul.f32.gmra.mxu0 %v1007
    %v1026 = vpop.f32.mrf.mxu0
    %v1027 = vadd.f32 0.0, %v1026
    %1028 = vdwg.mxu0
    %v1030 = vsel %vm1005, %v1003, 0
    %1032 = vmatpush.msra.mxu0 0.0
    %1033 = vmatpush.msra.mxu0 0.0
    %1034 = vmatpush.msra.mxu0 0.0
    %1035 = vmatpush.msra.mxu0 0.0
    %1036 = vmatpush.msra.mxu0 0.0
    %1037 = vmatpush.msra.mxu0 0.0
    %1038 = vmatpush.msra.mxu0 0.0
    %1039 = vmatpush.msra.mxu0 0.0
    %1040 = vmatpush.msra.mxu0 0.0
    %1041 = vmatpush.msra.mxu0 0.0
    %1042 = vmatpush.msra.mxu0 0.0
    %1043 = vmatpush.msra.mxu0 0.0
    %1044 = vmatpush.msra.mxu0 0.0
    %1045 = vmatpush.msra.mxu0 0.0
    %1046 = vmatpush.msra.mxu0 %v909
    %1047 = vmatpush.msra.mxu0 %v906
    %1048 = vmatmul.f32.gmra.mxu0 %v1030
    %v1049 = vpop.f32.mrf.mxu0
    %v1050 = vadd.f32 %v1027, %v1049
    %1051 = vdwg.mxu0
    %v1052 = vld [vmem:[%s10] sm:$0x3]
    %1054 = vset.pattern.permute.xlu0 0
    %1055 = vperm.xlu0 %1054, %v1052
    %v1056 = vpop.permute.xlu0 %1055
    %v1058 = vadd.f32 %v1050, %v1056
    %v1059 = vmax.f32 %v1058, 0.0
    %v1060 = vld [vmem:[%s11] sm:$0xff]
    %v1061 = vld [vmem:[%s11 + $0x8] sm:$0xff]
    %v1062 = vld [vmem:[%s11 + $0x10] sm:$0xff]
    %v1063 = vld [vmem:[%s11 + $0x18] sm:$0xff]
    %v1064 = vld [vmem:[%s12] sm:$0xff]
    %v1065 = vld [vmem:[%s12 + $0x8] sm:$0xff]
    %v1066 = vld [vmem:[%s12 + $0x10] sm:$0xff]
    %v1067 = vld [vmem:[%s12 + $0x18] sm:$0xff]
    %1069 = vset.pattern.permute.xlu0 0
    %1070 = vperm.xlu0 %1069, %v1064
    %v1071 = vpop.permute.xlu0 %1070
    %1074 = vset.pattern.permute.xlu0 0
    %1075 = vperm.xlu0 %1074, %v1065
    %v1076 = vpop.permute.xlu0 %1075
    %1079 = vset.pattern.permute.xlu0 0
    %1080 = vperm.xlu0 %1079, %v1066
    %v1081 = vpop.permute.xlu0 %1080
    %1084 = vset.pattern.permute.xlu0 0
    %1085 = vperm.xlu0 %1084, %v1067
    %v1086 = vpop.permute.xlu0 %1085
    %vm1088 = vcmask 15360
    %v1090 = vsel %vm1088, %v1060, 0
    %v1093 = vsel %vm1088, %v1061, 0
    %v1096 = vsel %vm1088, %v1062, 0
    %v1099 = vsel %vm1088, %v1063, 0
    %vm1101 = vcmask 1041408
    %v1103 = vsel %vm1101, %v1059, 0
    %1105 = vmatpush.msra.mxu0 0.0
    %1106 = vmatpush.msra.mxu0 0.0
    %1107 = vmatpush.msra.mxu0 0.0
    %1108 = vmatpush.msra.mxu0 0.0
    %1109 = vmatpush.msra.mxu0 0.0
    %1110 = vmatpush.msra.mxu0 0.0
    %1111 = vmatpush.msra.mxu0 0.0
    %1112 = vmatpush.msra.mxu0 0.0
    %1113 = vmatpush.msra.mxu0 0.0
    %1114 = vmatpush.msra.mxu0 0.0
    %1115 = vmatpush.msra.mxu0 0.0
    %1116 = vmatpush.msra.mxu0 0.0
    %1117 = vmatpush.msra.mxu0 0.0
    %1118 = vmatpush.msra.mxu0 0.0
    %1119 = vmatpush.msra.mxu0 0.0
    %1120 = vmatpush.msra.mxu0 %v1103
    %1121 = vmatmul.f32.gmra.mxu0 %v1090
    %v1122 = vpop.f32.mrf.mxu0
    %v1123 = vadd.f32 %v1071, %v1122
    %1124 = vmatmul.f32.gmra.mxu0 %v1093
    %v1125 = vpop.f32.mrf.mxu0
    %v1126 = vadd.f32 %v1076, %v1125
    %1127 = vmatmul.f32.gmra.mxu0 %v1096
    %v1128 = vpop.f32.mrf.mxu0
    %v1129 = vadd.f32 %v1081, %v1128
    %1130 = vmatmul.f32.gmra.mxu0 %v1099
    %v1131 = vpop.f32.mrf.mxu0
    %v1132 = vadd.f32 %v1086, %v1131
    %1133 = vdwg.mxu0
    %v1134 = vxor.u32 %v1123, 2147483648
    %v1135 = vxor.u32 %v1126, 2147483648
    %v1136 = vxor.u32 %v1129, 2147483648
    %v1137 = vxor.u32 %v1132, 2147483648
    %v1138 = vmul.f32 %v1134, 1.442695
    %v1139 = vpow.pop %v1138
    %v1140 = vmul.f32 %v1135, 1.442695
    %v1141 = vpow.pop %v1140
    %v1142 = vmul.f32 %v1136, 1.442695
    %v1143 = vpow.pop %v1142
    %v1144 = vmul.f32 %v1137, 1.442695
    %v1145 = vpow.pop %v1144
    %v1146 = vadd.f32 %v1139, 1.0
    %v1147 = vadd.f32 %v1141, 1.0
    %v1148 = vadd.f32 %v1143, 1.0
    %v1149 = vadd.f32 %v1145, 1.0
    %v1150 = vrcp.pop %v1146
    %v1151 = vmul.f32 %v1146, %v1150
    %v1152 = vsub.f32 1.0, %v1151
    %v1153 = vmul.f32 %v1150, %v1152
    %v1154 = vadd.f32 %v1150, %v1153
    %vm1155 = vweird.f32 %v1146
    %vm1156 = vweird.f32 %v1150
    %vm1157 = vmor %vm1155, %vm1156
    %v1158 = vsel %vm1157, %v1150, %v1154
    %v1159 = vand.u32 2147483647, %v1146
    %vm1160 = vcmp.eq.f32.partialorder %v1159, 8.507059e+37
    %v1161 = vand.u32 %v1146, 2147483648
    %v1162 = vor.u32 1.1754944e-38, %v1161
    %v1163 = vsel %vm1160, %v1162, %v1158
    %v1164 = vmul.f32 1.0, %v1163
    %v1165 = vrcp.pop %v1147
    %v1166 = vmul.f32 %v1147, %v1165
    %v1167 = vsub.f32 1.0, %v1166
    %v1168 = vmul.f32 %v1165, %v1167
    %v1169 = vadd.f32 %v1165, %v1168
    %vm1170 = vweird.f32 %v1147
    %vm1171 = vweird.f32 %v1165
    %vm1172 = vmor %vm1170, %vm1171
    %v1173 = vsel %vm1172, %v1165, %v1169
    %v1174 = vand.u32 2147483647, %v1147
    %vm1175 = vcmp.eq.f32.partialorder %v1174, 8.507059e+37
    %v1176 = vand.u32 %v1147, 2147483648
    %v1177 = vor.u32 1.1754944e-38, %v1176
    %v1178 = vsel %vm1175, %v1177, %v1173
    %v1179 = vmul.f32 1.0, %v1178
    %v1180 = vrcp.pop %v1148
    %v1181 = vmul.f32 %v1148, %v1180
    %v1182 = vsub.f32 1.0, %v1181
    %v1183 = vmul.f32 %v1180, %v1182
    %v1184 = vadd.f32 %v1180, %v1183
    %vm1185 = vweird.f32 %v1148
    %vm1186 = vweird.f32 %v1180
    %vm1187 = vmor %vm1185, %vm1186
    %v1188 = vsel %vm1187, %v1180, %v1184
    %v1189 = vand.u32 2147483647, %v1148
    %vm1190 = vcmp.eq.f32.partialorder %v1189, 8.507059e+37
    %v1191 = vand.u32 %v1148, 2147483648
    %v1192 = vor.u32 1.1754944e-38, %v1191
    %v1193 = vsel %vm1190, %v1192, %v1188
    %v1194 = vmul.f32 1.0, %v1193
    %v1195 = vrcp.pop %v1149
    %v1196 = vmul.f32 %v1149, %v1195
    %v1197 = vsub.f32 1.0, %v1196
    %v1198 = vmul.f32 %v1195, %v1197
    %v1199 = vadd.f32 %v1195, %v1198
    %vm1200 = vweird.f32 %v1149
    %vm1201 = vweird.f32 %v1195
    %vm1202 = vmor %vm1200, %vm1201
    %v1203 = vsel %vm1202, %v1195, %v1199
    %v1204 = vand.u32 2147483647, %v1149
    %vm1205 = vcmp.eq.f32.partialorder %v1204, 8.507059e+37
    %v1206 = vand.u32 %v1149, 2147483648
    %v1207 = vor.u32 1.1754944e-38, %v1206
    %v1208 = vsel %vm1205, %v1207, %v1203
    %v1209 = vmul.f32 1.0, %v1208
    %v1210 = vld [vmem:[%s3] sm:$0xff]
    %1212 = vst [vmem:[#allocation1] ss:$4 sm:$0xff] %v1210
    %v1213 = vld.sshfl [vmem:[#allocation1] sm:$0xff pattern:$0x73625140]
    %v1214 = vld.sshfl [vmem:[#allocation1 + $0x8] sm:$0xff pattern:$0x73625140]
    %v1215 = vld.sshfl [vmem:[#allocation1 + $0x10] sm:$0xff pattern:$0x73625140]
    %v1216 = vld.sshfl [vmem:[#allocation1 + $0x18] sm:$0xff pattern:$0x73625140]
    %v1218 = vsel %vm1088, %v1164, 0
    %v1221 = vsel %vm1088, %v1179, 0
    %v1223 = vsel %vm1101, %v1213, 0
    %v1225 = vsel %vm1101, %v1214, 0
    %v1227 = vsel %vm1101, %v1215, 0
    %v1229 = vsel %vm1101, %v1216, 0
    %1231 = vmatpush.msra.mxu0 0.0
    %1232 = vmatpush.msra.mxu0 0.0
    %1233 = vmatpush.msra.mxu0 0.0
    %1234 = vmatpush.msra.mxu0 0.0
    %1235 = vmatpush.msra.mxu0 0.0
    %1236 = vmatpush.msra.mxu0 0.0
    %1237 = vmatpush.msra.mxu0 0.0
    %1238 = vmatpush.msra.mxu0 0.0
    %1239 = vmatpush.msra.mxu0 0.0
    %1240 = vmatpush.msra.mxu0 0.0
    %1241 = vmatpush.msra.mxu0 0.0
    %1242 = vmatpush.msra.mxu0 0.0
    %1243 = vmatpush.msra.mxu0 0.0
    %1244 = vmatpush.msra.mxu0 0.0
    %1245 = vmatpush.msra.mxu0 0.0
    %1246 = vmatpush.msra.mxu0 %v1223
    %1247 = vmatmul.f32.gmra.mxu0 %v1218
    %v1248 = vpop.f32.mrf.mxu0
    %v1249 = vadd.f32 0.0, %v1248
    %1250 = vmatmul.f32.gmra.mxu0 %v1221
    %v1251 = vpop.f32.mrf.mxu0
    %v1252 = vadd.f32 0.0, %v1251
    %1253 = vdwg.mxu0
    %1254 = vmatpush.msra.mxu0 0.0
    %1255 = vmatpush.msra.mxu0 0.0
    %1256 = vmatpush.msra.mxu0 0.0
    %1257 = vmatpush.msra.mxu0 0.0
    %1258 = vmatpush.msra.mxu0 0.0
    %1259 = vmatpush.msra.mxu0 0.0
    %1260 = vmatpush.msra.mxu0 0.0
    %1261 = vmatpush.msra.mxu0 0.0
    %1262 = vmatpush.msra.mxu0 0.0
    %1263 = vmatpush.msra.mxu0 0.0
    %1264 = vmatpush.msra.mxu0 0.0
    %1265 = vmatpush.msra.mxu0 0.0
    %1266 = vmatpush.msra.mxu0 0.0
    %1267 = vmatpush.msra.mxu0 0.0
    %1268 = vmatpush.msra.mxu0 0.0
    %1269 = vmatpush.msra.mxu0 %v1225
    %1270 = vmatmul.f32.gmra.mxu0 %v1218
    %v1271 = vpop.f32.mrf.mxu0
    %v1272 = vadd.f32 0.0, %v1271
    %1273 = vmatmul.f32.gmra.mxu0 %v1221
    %v1274 = vpop.f32.mrf.mxu0
    %v1275 = vadd.f32 0.0, %v1274
    %1276 = vdwg.mxu0
    %1277 = vmatpush.msra.mxu0 0.0
    %1278 = vmatpush.msra.mxu0 0.0
    %1279 = vmatpush.msra.mxu0 0.0
    %1280 = vmatpush.msra.mxu0 0.0
    %1281 = vmatpush.msra.mxu0 0.0
    %1282 = vmatpush.msra.mxu0 0.0
    %1283 = vmatpush.msra.mxu0 0.0
    %1284 = vmatpush.msra.mxu0 0.0
    %1285 = vmatpush.msra.mxu0 0.0
    %1286 = vmatpush.msra.mxu0 0.0
    %1287 = vmatpush.msra.mxu0 0.0
    %1288 = vmatpush.msra.mxu0 0.0
    %1289 = vmatpush.msra.mxu0 0.0
    %1290 = vmatpush.msra.mxu0 0.0
    %1291 = vmatpush.msra.mxu0 0.0
    %1292 = vmatpush.msra.mxu0 %v1227
    %1293 = vmatmul.f32.gmra.mxu0 %v1218
    %v1294 = vpop.f32.mrf.mxu0
    %v1295 = vadd.f32 0.0, %v1294
    %1296 = vmatmul.f32.gmra.mxu0 %v1221
    %v1297 = vpop.f32.mrf.mxu0
    %v1298 = vadd.f32 0.0, %v1297
    %1299 = vdwg.mxu0
    %1300 = vmatpush.msra.mxu0 0.0
    %1301 = vmatpush.msra.mxu0 0.0
    %1302 = vmatpush.msra.mxu0 0.0
    %1303 = vmatpush.msra.mxu0 0.0
    %1304 = vmatpush.msra.mxu0 0.0
    %1305 = vmatpush.msra.mxu0 0.0
    %1306 = vmatpush.msra.mxu0 0.0
    %1307 = vmatpush.msra.mxu0 0.0
    %1308 = vmatpush.msra.mxu0 0.0
    %1309 = vmatpush.msra.mxu0 0.0
    %1310 = vmatpush.msra.mxu0 0.0
    %1311 = vmatpush.msra.mxu0 0.0
    %1312 = vmatpush.msra.mxu0 0.0
    %1313 = vmatpush.msra.mxu0 0.0
    %1314 = vmatpush.msra.mxu0 0.0
    %1315 = vmatpush.msra.mxu0 %v1229
    %1316 = vmatmul.f32.gmra.mxu0 %v1218
    %v1317 = vpop.f32.mrf.mxu0
    %v1318 = vadd.f32 0.0, %v1317
    %1319 = vmatmul.f32.gmra.mxu0 %v1221
    %v1320 = vpop.f32.mrf.mxu0
    %v1321 = vadd.f32 0.0, %v1320
    %1322 = vdwg.mxu0
    %v1323 = vmul.f32 %v201, %v1249
    %v1324 = vmul.f32 %v202, %v1272
    %v1325 = vmul.f32 %v203, %v1295
    %v1326 = vmul.f32 %v204, %v1318
    %v1327 = vmul.f32 %v205, %v1252
    %v1328 = vmul.f32 %v206, %v1275
    %v1329 = vmul.f32 %v207, %v1298
    %v1330 = vmul.f32 %v208, %v1321
    %1331 = vst [vmem:[#allocation1] ss:$4 sm:$0xff] %v1210
    %v1332 = vld.sshfl [vmem:[#allocation1] sm:$0xff pattern:$0x73625140]
    %v1333 = vld.sshfl [vmem:[#allocation1 + $0x8] sm:$0xff pattern:$0x73625140]
    %v1334 = vld.sshfl [vmem:[#allocation1 + $0x10] sm:$0xff pattern:$0x73625140]
    %v1335 = vld.sshfl [vmem:[#allocation1 + $0x18] sm:$0xff pattern:$0x73625140]
    %v1337 = vsel %vm1088, %v1194, 0
    %v1340 = vsel %vm1088, %v1209, 0
    %v1342 = vsel %vm1101, %v1332, 0
    %v1344 = vsel %vm1101, %v1333, 0
    %v1346 = vsel %vm1101, %v1334, 0
    %v1348 = vsel %vm1101, %v1335, 0
    %1350 = vmatpush.msra.mxu0 0.0
    %1351 = vmatpush.msra.mxu0 0.0
    %1352 = vmatpush.msra.mxu0 0.0
    %1353 = vmatpush.msra.mxu0 0.0
    %1354 = vmatpush.msra.mxu0 0.0
    %1355 = vmatpush.msra.mxu0 0.0
    %1356 = vmatpush.msra.mxu0 0.0
    %1357 = vmatpush.msra.mxu0 0.0
    %1358 = vmatpush.msra.mxu0 0.0
    %1359 = vmatpush.msra.mxu0 0.0
    %1360 = vmatpush.msra.mxu0 0.0
    %1361 = vmatpush.msra.mxu0 0.0
    %1362 = vmatpush.msra.mxu0 0.0
    %1363 = vmatpush.msra.mxu0 0.0
    %1364 = vmatpush.msra.mxu0 0.0
    %1365 = vmatpush.msra.mxu0 %v1342
    %1366 = vmatmul.f32.gmra.mxu0 %v1337
    %v1367 = vpop.f32.mrf.mxu0
    %v1368 = vadd.f32 0.0, %v1367
    %1369 = vmatmul.f32.gmra.mxu0 %v1340
    %v1370 = vpop.f32.mrf.mxu0
    %v1371 = vadd.f32 0.0, %v1370
    %1372 = vdwg.mxu0
    %1373 = vmatpush.msra.mxu0 0.0
    %1374 = vmatpush.msra.mxu0 0.0
    %1375 = vmatpush.msra.mxu0 0.0
    %1376 = vmatpush.msra.mxu0 0.0
    %1377 = vmatpush.msra.mxu0 0.0
    %1378 = vmatpush.msra.mxu0 0.0
    %1379 = vmatpush.msra.mxu0 0.0
    %1380 = vmatpush.msra.mxu0 0.0
    %1381 = vmatpush.msra.mxu0 0.0
    %1382 = vmatpush.msra.mxu0 0.0
    %1383 = vmatpush.msra.mxu0 0.0
    %1384 = vmatpush.msra.mxu0 0.0
    %1385 = vmatpush.msra.mxu0 0.0
    %1386 = vmatpush.msra.mxu0 0.0
    %1387 = vmatpush.msra.mxu0 0.0
    %1388 = vmatpush.msra.mxu0 %v1344
    %1389 = vmatmul.f32.gmra.mxu0 %v1337
    %v1390 = vpop.f32.mrf.mxu0
    %v1391 = vadd.f32 0.0, %v1390
    %1392 = vmatmul.f32.gmra.mxu0 %v1340
    %v1393 = vpop.f32.mrf.mxu0
    %v1394 = vadd.f32 0.0, %v1393
    %1395 = vdwg.mxu0
    %1396 = vmatpush.msra.mxu0 0.0
    %1397 = vmatpush.msra.mxu0 0.0
    %1398 = vmatpush.msra.mxu0 0.0
    %1399 = vmatpush.msra.mxu0 0.0
    %1400 = vmatpush.msra.mxu0 0.0
    %1401 = vmatpush.msra.mxu0 0.0
    %1402 = vmatpush.msra.mxu0 0.0
    %1403 = vmatpush.msra.mxu0 0.0
    %1404 = vmatpush.msra.mxu0 0.0
    %1405 = vmatpush.msra.mxu0 0.0
    %1406 = vmatpush.msra.mxu0 0.0
    %1407 = vmatpush.msra.mxu0 0.0
    %1408 = vmatpush.msra.mxu0 0.0
    %1409 = vmatpush.msra.mxu0 0.0
    %1410 = vmatpush.msra.mxu0 0.0
    %1411 = vmatpush.msra.mxu0 %v1346
    %1412 = vmatmul.f32.gmra.mxu0 %v1337
    %v1413 = vpop.f32.mrf.mxu0
    %v1414 = vadd.f32 0.0, %v1413
    %1415 = vmatmul.f32.gmra.mxu0 %v1340
    %v1416 = vpop.f32.mrf.mxu0
    %v1417 = vadd.f32 0.0, %v1416
    %1418 = vdwg.mxu0
    %1419 = vmatpush.msra.mxu0 0.0
    %1420 = vmatpush.msra.mxu0 0.0
    %1421 = vmatpush.msra.mxu0 0.0
    %1422 = vmatpush.msra.mxu0 0.0
    %1423 = vmatpush.msra.mxu0 0.0
    %1424 = vmatpush.msra.mxu0 0.0
    %1425 = vmatpush.msra.mxu0 0.0
    %1426 = vmatpush.msra.mxu0 0.0
    %1427 = vmatpush.msra.mxu0 0.0
    %1428 = vmatpush.msra.mxu0 0.0
    %1429 = vmatpush.msra.mxu0 0.0
    %1430 = vmatpush.msra.mxu0 0.0
    %1431 = vmatpush.msra.mxu0 0.0
    %1432 = vmatpush.msra.mxu0 0.0
    %1433 = vmatpush.msra.mxu0 0.0
    %1434 = vmatpush.msra.mxu0 %v1348
    %1435 = vmatmul.f32.gmra.mxu0 %v1337
    %v1436 = vpop.f32.mrf.mxu0
    %v1437 = vadd.f32 0.0, %v1436
    %1438 = vmatmul.f32.gmra.mxu0 %v1340
    %v1439 = vpop.f32.mrf.mxu0
    %v1440 = vadd.f32 0.0, %v1439
    %1441 = vdwg.mxu0
    %v1442 = vmul.f32 %v747, %v1368
    %v1443 = vmul.f32 %v748, %v1391
    %v1444 = vmul.f32 %v749, %v1414
    %v1445 = vmul.f32 %v750, %v1437
    %v1446 = vmul.f32 %v751, %v1371
    %v1447 = vmul.f32 %v752, %v1394
    %v1448 = vmul.f32 %v753, %v1417
    %v1449 = vmul.f32 %v754, %v1440
    %v1450 = vld [vmem:[%s13] sm:$0x3]
    %v1451 = vld [vmem:[%s14] sm:$0x3]
    %v1453 = vsel %vm1005, %v1451, 0
    %1455 = vmatpush.msra.mxu0 0.0
    %1456 = vmatpush.msra.mxu0 0.0
    %1457 = vmatpush.msra.mxu0 0.0
    %1458 = vmatpush.msra.mxu0 0.0
    %1459 = vmatpush.msra.mxu0 0.0
    %1460 = vmatpush.msra.mxu0 0.0
    %1461 = vmatpush.msra.mxu0 0.0
    %1462 = vmatpush.msra.mxu0 0.0
    %1463 = vmatpush.msra.mxu0 0.0
    %1464 = vmatpush.msra.mxu0 0.0
    %1465 = vmatpush.msra.mxu0 0.0
    %1466 = vmatpush.msra.mxu0 0.0
    %1467 = vmatpush.msra.mxu0 0.0
    %1468 = vmatpush.msra.mxu0 0.0
    %1469 = vmatpush.msra.mxu0 %v1446
    %1470 = vmatpush.msra.mxu0 %v1442
    %1471 = vmatmul.f32.gmra.mxu0 %v1453
    %v1472 = vpop.f32.mrf.mxu0
    %v1473 = vadd.f32 0.0, %v1472
    %1474 = vdwg.mxu0
    %1475 = vmatpush.msra.mxu0 0.0
    %1476 = vmatpush.msra.mxu0 0.0
    %1477 = vmatpush.msra.mxu0 0.0
    %1478 = vmatpush.msra.mxu0 0.0
    %1479 = vmatpush.msra.mxu0 0.0
    %1480 = vmatpush.msra.mxu0 0.0
    %1481 = vmatpush.msra.mxu0 0.0
    %1482 = vmatpush.msra.mxu0 0.0
    %1483 = vmatpush.msra.mxu0 0.0
    %1484 = vmatpush.msra.mxu0 0.0
    %1485 = vmatpush.msra.mxu0 0.0
    %1486 = vmatpush.msra.mxu0 0.0
    %1487 = vmatpush.msra.mxu0 0.0
    %1488 = vmatpush.msra.mxu0 0.0
    %1489 = vmatpush.msra.mxu0 %v1447
    %1490 = vmatpush.msra.mxu0 %v1443
    %1491 = vmatmul.f32.gmra.mxu0 %v1453
    %v1492 = vpop.f32.mrf.mxu0
    %v1493 = vadd.f32 0.0, %v1492
    %1494 = vdwg.mxu0
    %1495 = vmatpush.msra.mxu0 0.0
    %1496 = vmatpush.msra.mxu0 0.0
    %1497 = vmatpush.msra.mxu0 0.0
    %1498 = vmatpush.msra.mxu0 0.0
    %1499 = vmatpush.msra.mxu0 0.0
    %1500 = vmatpush.msra.mxu0 0.0
    %1501 = vmatpush.msra.mxu0 0.0
    %1502 = vmatpush.msra.mxu0 0.0
    %1503 = vmatpush.msra.mxu0 0.0
    %1504 = vmatpush.msra.mxu0 0.0
    %1505 = vmatpush.msra.mxu0 0.0
    %1506 = vmatpush.msra.mxu0 0.0
    %1507 = vmatpush.msra.mxu0 0.0
    %1508 = vmatpush.msra.mxu0 0.0
    %1509 = vmatpush.msra.mxu0 %v1448
    %1510 = vmatpush.msra.mxu0 %v1444
    %1511 = vmatmul.f32.gmra.mxu0 %v1453
    %v1512 = vpop.f32.mrf.mxu0
    %v1513 = vadd.f32 0.0, %v1512
    %1514 = vdwg.mxu0
    %1515 = vmatpush.msra.mxu0 0.0
    %1516 = vmatpush.msra.mxu0 0.0
    %1517 = vmatpush.msra.mxu0 0.0
    %1518 = vmatpush.msra.mxu0 0.0
    %1519 = vmatpush.msra.mxu0 0.0
    %1520 = vmatpush.msra.mxu0 0.0
    %1521 = vmatpush.msra.mxu0 0.0
    %1522 = vmatpush.msra.mxu0 0.0
    %1523 = vmatpush.msra.mxu0 0.0
    %1524 = vmatpush.msra.mxu0 0.0
    %1525 = vmatpush.msra.mxu0 0.0
    %1526 = vmatpush.msra.mxu0 0.0
    %1527 = vmatpush.msra.mxu0 0.0
    %1528 = vmatpush.msra.mxu0 0.0
    %1529 = vmatpush.msra.mxu0 %v1449
    %1530 = vmatpush.msra.mxu0 %v1445
    %1531 = vmatmul.f32.gmra.mxu0 %v1453
    %v1532 = vpop.f32.mrf.mxu0
    %v1533 = vadd.f32 0.0, %v1532
    %1534 = vdwg.mxu0
    %v1536 = vsel %vm1005, %v1450, 0
    %1538 = vmatpush.msra.mxu0 0.0
    %1539 = vmatpush.msra.mxu0 0.0
    %1540 = vmatpush.msra.mxu0 0.0
    %1541 = vmatpush.msra.mxu0 0.0
    %1542 = vmatpush.msra.mxu0 0.0
    %1543 = vmatpush.msra.mxu0 0.0
    %1544 = vmatpush.msra.mxu0 0.0
    %1545 = vmatpush.msra.mxu0 0.0
    %1546 = vmatpush.msra.mxu0 0.0
    %1547 = vmatpush.msra.mxu0 0.0
    %1548 = vmatpush.msra.mxu0 0.0
    %1549 = vmatpush.msra.mxu0 0.0
    %1550 = vmatpush.msra.mxu0 0.0
    %1551 = vmatpush.msra.mxu0 0.0
    %1552 = vmatpush.msra.mxu0 %v1327
    %1553 = vmatpush.msra.mxu0 %v1323
    %1554 = vmatmul.f32.gmra.mxu0 %v1536
    %v1555 = vpop.f32.mrf.mxu0
    %v1556 = vadd.f32 %v1473, %v1555
    %1557 = vdwg.mxu0
    %1558 = vmatpush.msra.mxu0 0.0
    %1559 = vmatpush.msra.mxu0 0.0
    %1560 = vmatpush.msra.mxu0 0.0
    %1561 = vmatpush.msra.mxu0 0.0
    %1562 = vmatpush.msra.mxu0 0.0
    %1563 = vmatpush.msra.mxu0 0.0
    %1564 = vmatpush.msra.mxu0 0.0
    %1565 = vmatpush.msra.mxu0 0.0
    %1566 = vmatpush.msra.mxu0 0.0
    %1567 = vmatpush.msra.mxu0 0.0
    %1568 = vmatpush.msra.mxu0 0.0
    %1569 = vmatpush.msra.mxu0 0.0
    %1570 = vmatpush.msra.mxu0 0.0
    %1571 = vmatpush.msra.mxu0 0.0
    %1572 = vmatpush.msra.mxu0 %v1328
    %1573 = vmatpush.msra.mxu0 %v1324
    %1574 = vmatmul.f32.gmra.mxu0 %v1536
    %v1575 = vpop.f32.mrf.mxu0
    %v1576 = vadd.f32 %v1493, %v1575
    %1577 = vdwg.mxu0
    %1578 = vmatpush.msra.mxu0 0.0
    %1579 = vmatpush.msra.mxu0 0.0
    %1580 = vmatpush.msra.mxu0 0.0
    %1581 = vmatpush.msra.mxu0 0.0
    %1582 = vmatpush.msra.mxu0 0.0
    %1583 = vmatpush.msra.mxu0 0.0
    %1584 = vmatpush.msra.mxu0 0.0
    %1585 = vmatpush.msra.mxu0 0.0
    %1586 = vmatpush.msra.mxu0 0.0
    %1587 = vmatpush.msra.mxu0 0.0
    %1588 = vmatpush.msra.mxu0 0.0
    %1589 = vmatpush.msra.mxu0 0.0
    %1590 = vmatpush.msra.mxu0 0.0
    %1591 = vmatpush.msra.mxu0 0.0
    %1592 = vmatpush.msra.mxu0 %v1329
    %1593 = vmatpush.msra.mxu0 %v1325
    %1594 = vmatmul.f32.gmra.mxu0 %v1536
    %v1595 = vpop.f32.mrf.mxu0
    %v1596 = vadd.f32 %v1513, %v1595
    %1597 = vdwg.mxu0
    %1598 = vmatpush.msra.mxu0 0.0
    %1599 = vmatpush.msra.mxu0 0.0
    %1600 = vmatpush.msra.mxu0 0.0
    %1601 = vmatpush.msra.mxu0 0.0
    %1602 = vmatpush.msra.mxu0 0.0
    %1603 = vmatpush.msra.mxu0 0.0
    %1604 = vmatpush.msra.mxu0 0.0
    %1605 = vmatpush.msra.mxu0 0.0
    %1606 = vmatpush.msra.mxu0 0.0
    %1607 = vmatpush.msra.mxu0 0.0
    %1608 = vmatpush.msra.mxu0 0.0
    %1609 = vmatpush.msra.mxu0 0.0
    %1610 = vmatpush.msra.mxu0 0.0
    %1611 = vmatpush.msra.mxu0 0.0
    %1612 = vmatpush.msra.mxu0 %v1330
    %1613 = vmatpush.msra.mxu0 %v1326
    %1614 = vmatmul.f32.gmra.mxu0 %v1536
    %v1615 = vpop.f32.mrf.mxu0
    %v1616 = vadd.f32 %v1533, %v1615
    %1617 = vdwg.mxu0
    %v1618 = vld [vmem:[%s15] sm:$0x3]
    %1620 = vset.pattern.permute.xlu0 0
    %1621 = vperm.xlu0 %1620, %v1618
    %v1622 = vpop.permute.xlu0 %1621
    %v1624 = vadd.f32 %v1556, %v1622
    %v1625 = vadd.f32 %v1576, %v1622
    %v1626 = vadd.f32 %v1596, %v1622
    %v1627 = vadd.f32 %v1616, %v1622
    %v1628 = vmax.f32 %v1624, 0.0
    %v1629 = vmax.f32 %v1625, 0.0
    %v1630 = vmax.f32 %v1626, 0.0
    %v1631 = vmax.f32 %v1627, 0.0
    %v1632 = vld [vmem:[%s16] sm:$0x3]
    %v1633 = vld [vmem:[%s17] sm:$0x3]
    %1634 = vrot.lane.b32.xlu0 %v1628, 17
    %v1635 = vpop.permute.xlu0 %1634
    %1636 = vrot.lane.b32.xlu0 %v1629, 17
    %v1637 = vpop.permute.xlu0 %1636
    %1638 = vrot.lane.b32.xlu0 %v1630, 17
    %v1639 = vpop.permute.xlu0 %1638
    %1640 = vrot.lane.b32.xlu0 %v1631, 17
    %v1641 = vpop.permute.xlu0 %1640
    %v1642 = vsel %vm231, %v1639, %v1641
    %v1643 = vsel %vm231, %v1637, %v1639
    %v1644 = vsel %vm231, %v1635, %v1637
    %v1645 = vsel %vm231, %v1641, %v1635
    %1647 = vset.pattern.permute.xlu0 0
    %1648 = vperm.xlu0 %1647, %v1632
    %v1649 = vpop.permute.xlu0 %1648
    %v1651 = vmul.f32 %v1645, %v1649
    %v1652 = vmul.f32 %v1644, %v1649
    %v1653 = vmul.f32 %v1643, %v1649
    %v1654 = vmul.f32 %v1642, %v1649
    %v1655 = vmul.f32 %v1651, %v258
    %v1656 = vmul.f32 %v1652, %v259
    %v1657 = vmul.f32 %v1653, %v260
    %v1658 = vmul.f32 %v1654, %v261
    %v1659 = vadd.f32 %v1655, 0.0
    %v1660 = vadd.f32 %v1656, 0.0
    %v1661 = vadd.f32 %v1657, 0.0
    %v1662 = vadd.f32 %v1658, 0.0
    %1663 = vrot.lane.b32.xlu0 %v1628, 16
    %v1664 = vpop.permute.xlu0 %1663
    %1665 = vrot.lane.b32.xlu0 %v1629, 16
    %v1666 = vpop.permute.xlu0 %1665
    %1667 = vrot.lane.b32.xlu0 %v1630, 16
    %v1668 = vpop.permute.xlu0 %1667
    %1669 = vrot.lane.b32.xlu0 %v1631, 16
    %v1670 = vpop.permute.xlu0 %1669
    %v1671 = vsel %vm294, %v1668, %v1670
    %v1672 = vsel %vm294, %v1666, %v1668
    %v1673 = vsel %vm294, %v1664, %v1666
    %v1674 = vsel %vm294, %v1670, %v1664
    %1675 = vset.pattern.permute.xlu0 1
    %1676 = vperm.xlu0 %1675, %v1632
    %v1677 = vpop.permute.xlu0 %1676
    %v1679 = vmul.f32 %v1674, %v1677
    %v1680 = vmul.f32 %v1673, %v1677
    %v1681 = vmul.f32 %v1672, %v1677
    %v1682 = vmul.f32 %v1671, %v1677
    %v1683 = vmul.f32 %v1679, %v319
    %v1684 = vmul.f32 %v1680, %v320
    %v1685 = vmul.f32 %v1681, %v321
    %v1686 = vmul.f32 %v1682, %v322
    %v1687 = vadd.f32 %v1659, %v1683
    %v1688 = vadd.f32 %v1660, %v1684
    %v1689 = vadd.f32 %v1661, %v1685
    %v1690 = vadd.f32 %v1662, %v1686
    %1691 = vrot.lane.b32.xlu0 %v1628, 15
    %v1692 = vpop.permute.xlu0 %1691
    %1693 = vrot.lane.b32.xlu0 %v1629, 15
    %v1694 = vpop.permute.xlu0 %1693
    %1695 = vrot.lane.b32.xlu0 %v1630, 15
    %v1696 = vpop.permute.xlu0 %1695
    %1697 = vrot.lane.b32.xlu0 %v1631, 15
    %v1698 = vpop.permute.xlu0 %1697
    %v1699 = vsel %vm355, %v1696, %v1698
    %v1700 = vsel %vm355, %v1694, %v1696
    %v1701 = vsel %vm355, %v1692, %v1694
    %v1702 = vsel %vm355, %v1698, %v1692
    %1703 = vset.pattern.permute.xlu0 2
    %1704 = vperm.xlu0 %1703, %v1632
    %v1705 = vpop.permute.xlu0 %1704
    %v1707 = vmul.f32 %v1702, %v1705
    %v1708 = vmul.f32 %v1701, %v1705
    %v1709 = vmul.f32 %v1700, %v1705
    %v1710 = vmul.f32 %v1699, %v1705
    %v1711 = vmul.f32 %v1707, %v380
    %v1712 = vmul.f32 %v1708, %v381
    %v1713 = vmul.f32 %v1709, %v382
    %v1714 = vmul.f32 %v1710, %v383
    %v1715 = vadd.f32 %v1687, %v1711
    %v1716 = vadd.f32 %v1688, %v1712
    %v1717 = vadd.f32 %v1689, %v1713
    %v1718 = vadd.f32 %v1690, %v1714
    %1719 = vrot.lane.b32.xlu0 %v1628, 1
    %v1720 = vpop.permute.xlu0 %1719
    %1721 = vrot.lane.b32.xlu0 %v1629, 1
    %v1722 = vpop.permute.xlu0 %1721
    %1723 = vrot.lane.b32.xlu0 %v1630, 1
    %v1724 = vpop.permute.xlu0 %1723
    %1725 = vrot.lane.b32.xlu0 %v1631, 1
    %v1726 = vpop.permute.xlu0 %1725
    %v1727 = vsel %vm416, %v1724, %v1726
    %v1728 = vsel %vm416, %v1722, %v1724
    %v1729 = vsel %vm416, %v1720, %v1722
    %v1730 = vsel %vm416, %v1726, %v1720
    %1731 = vset.pattern.permute.xlu0 3
    %1732 = vperm.xlu0 %1731, %v1632
    %v1733 = vpop.permute.xlu0 %1732
    %v1735 = vmul.f32 %v1730, %v1733
    %v1736 = vmul.f32 %v1729, %v1733
    %v1737 = vmul.f32 %v1728, %v1733
    %v1738 = vmul.f32 %v1727, %v1733
    %v1739 = vmul.f32 %v1735, %v441
    %v1740 = vmul.f32 %v1736, %v442
    %v1741 = vmul.f32 %v1737, %v443
    %v1742 = vmul.f32 %v1738, %v444
    %v1743 = vadd.f32 %v1715, %v1739
    %v1744 = vadd.f32 %v1716, %v1740
    %v1745 = vadd.f32 %v1717, %v1741
    %v1746 = vadd.f32 %v1718, %v1742
    %1747 = vset.pattern.permute.xlu0 4
    %1748 = vperm.xlu0 %1747, %v1632
    %v1749 = vpop.permute.xlu0 %1748
    %v1751 = vmul.f32 %v1628, %v1749
    %v1752 = vmul.f32 %v1629, %v1749
    %v1753 = vmul.f32 %v1630, %v1749
    %v1754 = vmul.f32 %v1631, %v1749
    %v1755 = vadd.f32 %v1743, %v1751
    %v1756 = vadd.f32 %v1744, %v1752
    %v1757 = vadd.f32 %v1745, %v1753
    %v1758 = vadd.f32 %v1746, %v1754
    %1759 = vrot.lane.b32.xlu0 %v1628, 127
    %v1760 = vpop.permute.xlu0 %1759
    %1761 = vrot.lane.b32.xlu0 %v1629, 127
    %v1762 = vpop.permute.xlu0 %1761
    %1763 = vrot.lane.b32.xlu0 %v1630, 127
    %v1764 = vpop.permute.xlu0 %1763
    %1765 = vrot.lane.b32.xlu0 %v1631, 127
    %v1766 = vpop.permute.xlu0 %1765
    %v1767 = vsel %vm501, %v1764, %v1766
    %v1768 = vsel %vm501, %v1762, %v1764
    %v1769 = vsel %vm501, %v1760, %v1762
    %v1770 = vsel %vm501, %v1766, %v1760
    %1771 = vset.pattern.permute.xlu0 5
    %1772 = vperm.xlu0 %1771, %v1632
    %v1773 = vpop.permute.xlu0 %1772
    %v1775 = vmul.f32 %v1769, %v1773
    %v1776 = vmul.f32 %v1768, %v1773
    %v1777 = vmul.f32 %v1767, %v1773
    %v1778 = vmul.f32 %v1770, %v1773
    %v1779 = vmul.f32 %v1775, %v526
    %v1780 = vmul.f32 %v1776, %v527
    %v1781 = vmul.f32 %v1777, %v528
    %v1782 = vmul.f32 %v1778, %v529
    %v1783 = vadd.f32 %v1755, %v1779
    %v1784 = vadd.f32 %v1756, %v1780
    %v1785 = vadd.f32 %v1757, %v1781
    %v1786 = vadd.f32 %v1758, %v1782
    %1787 = vrot.lane.b32.xlu0 %v1628, 113
    %v1788 = vpop.permute.xlu0 %1787
    %1789 = vrot.lane.b32.xlu0 %v1629, 113
    %v1790 = vpop.permute.xlu0 %1789
    %1791 = vrot.lane.b32.xlu0 %v1630, 113
    %v1792 = vpop.permute.xlu0 %1791
    %1793 = vrot.lane.b32.xlu0 %v1631, 113
    %v1794 = vpop.permute.xlu0 %1793
    %v1795 = vsel %vm562, %v1792, %v1794
    %v1796 = vsel %vm562, %v1790, %v1792
    %v1797 = vsel %vm562, %v1788, %v1790
    %v1798 = vsel %vm562, %v1794, %v1788
    %1799 = vset.pattern.permute.xlu0 6
    %1800 = vperm.xlu0 %1799, %v1632
    %v1801 = vpop.permute.xlu0 %1800
    %v1803 = vmul.f32 %v1797, %v1801
    %v1804 = vmul.f32 %v1796, %v1801
    %v1805 = vmul.f32 %v1795, %v1801
    %v1806 = vmul.f32 %v1798, %v1801
    %v1807 = vmul.f32 %v1803, %v587
    %v1808 = vmul.f32 %v1804, %v588
    %v1809 = vmul.f32 %v1805, %v589
    %v1810 = vmul.f32 %v1806, %v590
    %v1811 = vadd.f32 %v1783, %v1807
    %v1812 = vadd.f32 %v1784, %v1808
    %v1813 = vadd.f32 %v1785, %v1809
    %v1814 = vadd.f32 %v1786, %v1810
    %1815 = vrot.lane.b32.xlu0 %v1628, 112
    %v1816 = vpop.permute.xlu0 %1815
    %1817 = vrot.lane.b32.xlu0 %v1629, 112
    %v1818 = vpop.permute.xlu0 %1817
    %1819 = vrot.lane.b32.xlu0 %v1630, 112
    %v1820 = vpop.permute.xlu0 %1819
    %1821 = vrot.lane.b32.xlu0 %v1631, 112
    %v1822 = vpop.permute.xlu0 %1821
    %v1823 = vsel %vm623, %v1820, %v1822
    %v1824 = vsel %vm623, %v1818, %v1820
    %v1825 = vsel %vm623, %v1816, %v1818
    %v1826 = vsel %vm623, %v1822, %v1816
    %1827 = vset.pattern.permute.xlu0 7
    %1828 = vperm.xlu0 %1827, %v1632
    %v1829 = vpop.permute.xlu0 %1828
    %v1831 = vmul.f32 %v1825, %v1829
    %v1832 = vmul.f32 %v1824, %v1829
    %v1833 = vmul.f32 %v1823, %v1829
    %v1834 = vmul.f32 %v1826, %v1829
    %v1835 = vmul.f32 %v1831, %v648
    %v1836 = vmul.f32 %v1832, %v649
    %v1837 = vmul.f32 %v1833, %v650
    %v1838 = vmul.f32 %v1834, %v651
    %v1839 = vadd.f32 %v1811, %v1835
    %v1840 = vadd.f32 %v1812, %v1836
    %v1841 = vadd.f32 %v1813, %v1837
    %v1842 = vadd.f32 %v1814, %v1838
    %1843 = vrot.lane.b32.xlu0 %v1628, 111
    %v1844 = vpop.permute.xlu0 %1843
    %1845 = vrot.lane.b32.xlu0 %v1629, 111
    %v1846 = vpop.permute.xlu0 %1845
    %1847 = vrot.lane.b32.xlu0 %v1630, 111
    %v1848 = vpop.permute.xlu0 %1847
    %1849 = vrot.lane.b32.xlu0 %v1631, 111
    %v1850 = vpop.permute.xlu0 %1849
    %v1851 = vsel %vm684, %v1848, %v1850
    %v1852 = vsel %vm684, %v1846, %v1848
    %v1853 = vsel %vm684, %v1844, %v1846
    %v1854 = vsel %vm684, %v1850, %v1844
    %1855 = vset.pattern.permute.xlu0 8
    %1856 = vperm.xlu0 %1855, %v1632
    %v1857 = vpop.permute.xlu0 %1856
    %v1859 = vmul.f32 %v1853, %v1857
    %v1860 = vmul.f32 %v1852, %v1857
    %v1861 = vmul.f32 %v1851, %v1857
    %v1862 = vmul.f32 %v1854, %v1857
    %v1863 = vmul.f32 %v1859, %v709
    %v1864 = vmul.f32 %v1860, %v710
    %v1865 = vmul.f32 %v1861, %v711
    %v1866 = vmul.f32 %v1862, %v712
    %v1867 = vadd.f32 %v1839, %v1863
    %v1868 = vadd.f32 %v1840, %v1864
    %v1869 = vadd.f32 %v1841, %v1865
    %v1870 = vadd.f32 %v1842, %v1866
    %1872 = vset.pattern.permute.xlu0 0
    %1873 = vperm.xlu0 %1872, %v1633
    %v1874 = vpop.permute.xlu0 %1873
    %v1876 = vadd.f32 %v1867, %v1874
    %v1877 = vadd.f32 %v1868, %v1874
    %v1878 = vadd.f32 %v1869, %v1874
    %v1879 = vadd.f32 %v1870, %v1874
    %v1880 = vmax.f32 %v1876, 0.0
    %v1881 = vmax.f32 %v1877, 0.0
    %v1882 = vmax.f32 %v1878, 0.0
    %v1883 = vmax.f32 %v1879, 0.0
    %1884 = vst [vmem:[#allocation1] ss:$2 sm:$0xff] %v60
    %s1885 = scalar_lea.vmem [#allocation1], 16
    %1886 = vst [vmem:[%s1885] ss:$2 sm:$0xff] %v61
    %v1887 = vld.sshfl [vmem:[#allocation1] sm:$0xff pattern:$0x75316420]
    %v1888 = vld.sshfl [vmem:[#allocation1 + $0x8] sm:$0xff pattern:$0x75316420]
    %v1889 = vld.sshfl [vmem:[#allocation1 + $0x10] sm:$0xff pattern:$0x75316420]
    %v1890 = vld.sshfl [vmem:[#allocation1 + $0x18] sm:$0xff pattern:$0x75316420]
    %v1895 = vadd.f32 %v1628, %v1887
    %v1896 = vadd.f32 %v1629, %v1888
    %v1897 = vadd.f32 %v1630, %v1889
    %v1898 = vadd.f32 %v1631, %v1890
    %v1903 = vrot.slane %v1896, 4
    %v1904 = vrot.slane %v1898, 4
    %v1905 = vsel %vm100, %v1895, %v1903
    %v1906 = vsel %vm100, %v1897, %v1904
    %1909 = vst [vmem:[#allocation2] sm:$0x33] %v1905
    %1910 = vst [vmem:[#allocation2 + $0x8] sm:$0x33] %v1906
    %1911 = vst [vmem:[#allocation1] ss:$2 sm:$0xff] %v60
    %s1912 = scalar_lea.vmem [#allocation1], 16
    %1913 = vst [vmem:[%s1912] ss:$2 sm:$0xff] %v61
    %v1914 = vld.sshfl [vmem:[#allocation1] sm:$0xff pattern:$0x75316420]
    %v1915 = vld.sshfl [vmem:[#allocation1 + $0x8] sm:$0xff pattern:$0x75316420]
    %v1916 = vld.sshfl [vmem:[#allocation1 + $0x10] sm:$0xff pattern:$0x75316420]
    %v1917 = vld.sshfl [vmem:[#allocation1 + $0x18] sm:$0xff pattern:$0x75316420]
    %v1918 = vrot.slane %v1914, 2
    %v1919 = vrot.slane %v1915, 2
    %v1920 = vrot.slane %v1916, 2
    %v1921 = vrot.slane %v1917, 2
    %v1926 = vadd.f32 %v1880, %v1918
    %v1927 = vadd.f32 %v1881, %v1919
    %v1928 = vadd.f32 %v1882, %v1920
    %v1929 = vadd.f32 %v1883, %v1921
    %v1934 = vrot.slane %v1927, 4
    %v1935 = vrot.slane %v1929, 4
    %v1936 = vsel %vm100, %v1926, %v1934
    %v1937 = vsel %vm100, %v1928, %v1935
    %v1938 = vrot.slane %v1936, 6
    %v1939 = vrot.slane %v1937, 6
    %1942 = vst [vmem:[#allocation2] sm:$0xcc] %v1938
    %1943 = vst [vmem:[#allocation2 + $0x8] sm:$0xcc] %v1939
    // Predicated region
    $region74: #{tpu_custom_call.1} parent=1 // pred_check
      _
    $region75: #{tpu_custom_call.1} parent=1 // pred_check_branch
      %1945 = sbr.rel (0) target = $region77
    $region76: #{tpu_custom_call.1} parent=1 // pred_region
      %1947 = vsyncadd [#allocation3], 0
      %s1949 = sshll.u32 [#allocation2], 4
      %s1950 = int_to_ptr.vmem [resolvable:$true] %s1949
      %s1951 = sshll.u32 %s18, 4
      %s1952 = int_to_ptr.hbm [resolvable:$true] %s1951
      %1954 = dma.vmem_to_hbm [thread:$0]  %s1950, 256, %s1952, [#allocation3]
    $region77: #{tpu_custom_call.1} parent=1 // pred_fallthru
      _
    // Predicated region
    $region78: #{tpu_custom_call.1} parent=1 // pred_check
      _
    $region79: #{tpu_custom_call.1} parent=1 // pred_check_branch
      %1956 = sbr.rel (0) target = $region81
    $region80: #{tpu_custom_call.1} parent=1 // pred_region
      %1958 = dma.done [#allocation3], 256
    $region81: #{tpu_custom_call.1} parent=1 // pred_fallthru
      _
    %1959 = vsyncpa [#allocation3], 1

</llo_original>
